<compile_context>
chip_gen: v6e
topology: v6e:2x2x1
jax: 0.10.0
libtpu: 0.0.40
codegen_flags: <defaults>
</compile_context>

<pallas_src>
import math

import jax
import jax.numpy as jnp
from jax.experimental import pallas as pl
from jax.experimental.pallas import tpu as pltpu

_DIMS = [28 * 28, 128, 64, 36, 18, 9, 18, 36, 64, 128, 28 * 28]
_NUM_LAYERS = len(_DIMS) - 1  # 10
# Activation applied after each layer.
_ACTS = ["relu", "relu", "relu", "relu", "none",
         "relu", "relu", "relu", "relu", "sigmoid"]

_LANE = 128
_SUBLANE = 8
_D_IN = _DIMS[0]                                   # 784
_D_PAD = ((_D_IN + _LANE - 1) // _LANE) * _LANE    # 896 (lane-dense, 7x128)


def _round_up(v, m):
    return ((v + m - 1) // m) * m


def _ae_kernel(x_ref, *refs):
    """refs = (w0..w9, b0..b9, out_ref); every tile lives in VMEM.

    x_ref: (bt, 896) bf16.  Weights bf16, biases f32.  The matmul chain runs
    with bf16 operands and f32 accumulation; activations are computed in f32
    and re-cast to bf16 only as the next matmul's LHS.
    """
    w_refs = refs[:_NUM_LAYERS]
    b_refs = refs[_NUM_LAYERS:2 * _NUM_LAYERS]
    out_ref = refs[2 * _NUM_LAYERS]

    h = x_ref[...]  # bf16 MXU operand
    for li in range(_NUM_LAYERS):
        acc = jnp.dot(h, w_refs[li][...],
                      preferred_element_type=jnp.float32)
        acc = acc + b_refs[li][...]       # one broadcast-add (VPU) per layer
        act = _ACTS[li]
        if act == "relu":
            acc = jnp.maximum(acc, 0.0)
        elif act == "sigmoid":
            acc = jax.nn.sigmoid(acc)     # EUP
        # "none": pass through (the 9-dim code)
        if li < _NUM_LAYERS - 1:
            h = acc.astype(jnp.bfloat16)
        else:
            out_ref[...] = acc.astype(out_ref.dtype)


def init_ae_params(key):
    """Deterministic init mirroring torch.nn.Linear defaults:
    U(-1/sqrt(fan_in), 1/sqrt(fan_in)) for weight and bias.
    Weights stored (in_features, out_features); biases (1, out_features)."""
    weights, biases = [], []
    for li in range(_NUM_LAYERS):
        fan_in, fan_out = _DIMS[li], _DIMS[li + 1]
        k = 1.0 / math.sqrt(fan_in)
        key, wk, bk = jax.random.split(key, 3)
        weights.append(jax.random.uniform(wk, (fan_in, fan_out),
                                          jnp.float32, -k, k))
        biases.append(jax.random.uniform(bk, (1, fan_out),
                                         jnp.float32, -k, k))
    return weights, biases


def _pad_params_for_kernel(weights, biases):
    """Lane-pad the 784 dims to 896 and cast weights to bf16 MXU operands.
    Padding rows of w0 are zero (and padded x columns are zero), so layer-0
    output is unchanged; padded output columns of layer 9 are sliced off."""
    w_p, b_p = [], []
    for li in range(_NUM_LAYERS):
        w, b = weights[li], biases[li]
        if li == 0:
            w = jnp.pad(w, ((0, _D_PAD - _D_IN), (0, 0)))
        if li == _NUM_LAYERS - 1:
            w = jnp.pad(w, ((0, 0), (0, _D_PAD - _D_IN)))
            b = jnp.pad(b, ((0, 0), (0, _D_PAD - _D_IN)))
        w_p.append(w.astype(jnp.bfloat16))
        b_p.append(b.astype(jnp.float32))
    return w_p, b_p


def ae_forward(x, weights, biases, *, batch_tile=256):
    """Autoencoder forward pass: x (B, 784) f32 -> decoded (B, 784) f32."""
    B, D = x.shape
    assert D == _D_IN

    # Batch tile: multiple of 8 sublanes, capped by the (rounded-up) batch.
    bt = min(batch_tile, _round_up(B, _SUBLANE))
    bt = max(_SUBLANE, (bt // _SUBLANE) * _SUBLANE)
    B_pad = _round_up(B, bt)

    # Lane-pad features 784 -> 896, pad batch to a tile multiple, bf16 in.
    x_p = jnp.pad(x.astype(jnp.bfloat16),
                  ((0, B_pad - B), (0, _D_PAD - _D_IN)))
    w_p, b_p = _pad_params_for_kernel(weights, biases)

    in_specs = [pl.BlockSpec((bt, _D_PAD), lambda i: (i, 0))]
    # Weights/biases: full arrays with a constant block index -> DMA'd once,
    # resident in VMEM for every grid step.
    for w in w_p:
        in_specs.append(pl.BlockSpec(w.shape, lambda i: (0, 0)))
    for b in b_p:
        in_specs.append(pl.BlockSpec(b.shape, lambda i: (0, 0)))
    out_spec = pl.BlockSpec((bt, _D_PAD), lambda i: (i, 0))

    flops = 2 * B_pad * sum(_DIMS[i] * _DIMS[i + 1]
                            for i in range(_NUM_LAYERS))
    transcendentals = B_pad * _DIMS[-1]  # final sigmoid
    bytes_accessed = (x_p.size * 2 + B_pad * _D_PAD * 4
                      + sum(w.size * 2 for w in w_p)
                      + sum(b.size * 4 for b in b_p))

    fn = pl.pallas_call(
        _ae_kernel,
        out_shape=jax.ShapeDtypeStruct((B_pad, _D_PAD), jnp.float32),
        grid_spec=pltpu.PrefetchScalarGridSpec(
            num_scalar_prefetch=0,
            grid=(B_pad // bt,),
            in_specs=in_specs,
            out_specs=out_spec,
        ),
        compiler_params=pltpu.CompilerParams(
            dimension_semantics=("parallel",),
            vmem_limit_bytes=32 * 1024 * 1024),
        cost_estimate=pl.CostEstimate(
            flops=flops,
            transcendentals=transcendentals,
            bytes_accessed=bytes_accessed),
    )
    out = fn(x_p, *w_p, *b_p)
    return out[:B, :_D_IN]


def ae_forward_ref_bf16(x, weights, biases):
    """Pure-JAX reference using the kernel's bf16-operand / f32-accum path."""
    h = x.astype(jnp.bfloat16)
    acc = None
    for li in range(_NUM_LAYERS):
        acc = jnp.dot(h, weights[li].astype(jnp.bfloat16),
                      preferred_element_type=jnp.float32) + biases[li]
        if _ACTS[li] == "relu":
            acc = jnp.maximum(acc, 0.0)
        elif _ACTS[li] == "sigmoid":
            acc = jax.nn.sigmoid(acc)
        h = acc.astype(jnp.bfloat16)
    return acc


def ae_forward_ref_f32(x, weights, biases):
    """Full-f32 reference (matches the PyTorch module's numerics)."""
    h = x.astype(jnp.float32)
    for li in range(_NUM_LAYERS):
        h = h @ weights[li] + biases[li]
        if _ACTS[li] == "relu":
            h = jnp.maximum(h, 0.0)
        elif _ACTS[li] == "sigmoid":
            h = jax.nn.sigmoid(h)
    return h


if __name__ == "__main__":
    key = jax.random.PRNGKey(0)
    pkey, xkey = jax.random.split(key)

    weights, biases = init_ae_params(pkey)

    # Small demo shape: B=37 with a 16-row tile exercises both batch padding
    # (37 -> 48) and a multi-step grid (3 steps) through the pipeline.
    B = 37
    x = jax.random.uniform(xkey, (B, 28 * 28), jnp.float32)

    out = ae_forward(x, weights, biases, batch_tile=16)
    out = jax.block_until_ready(out)
    assert out.shape == (B, 28 * 28)

    # Tight check against a reference using the same bf16/f32 numerics.
    ref_bf16 = ae_forward_ref_bf16(x, weights, biases)
    assert jnp.allclose(out, ref_bf16, atol=5e-3, rtol=5e-3), \
        "mismatch vs bf16-path reference"

    # Loose semantic check against the full-f32 (PyTorch-equivalent) reference.
    ref_f32 = ae_forward_ref_f32(x, weights, biases)
    assert jnp.allclose(out, ref_f32, atol=3e-2), \
        "mismatch vs f32 reference"

    print("KERNEL_OK")
</pallas_src>

<mosaic_0001>
module attributes {stable_mosaic.version = 11 : i64} {
  func.func @_ae_kernel(%arg0: i32, %arg1: memref<16x896xbf16, #tpu.memory_space<vmem>>, %arg2: memref<896x128xbf16, #tpu.memory_space<vmem>>, %arg3: memref<128x64xbf16, #tpu.memory_space<vmem>>, %arg4: memref<64x36xbf16, #tpu.memory_space<vmem>>, %arg5: memref<36x18xbf16, #tpu.memory_space<vmem>>, %arg6: memref<18x9xbf16, #tpu.memory_space<vmem>>, %arg7: memref<9x18xbf16, #tpu.memory_space<vmem>>, %arg8: memref<18x36xbf16, #tpu.memory_space<vmem>>, %arg9: memref<36x64xbf16, #tpu.memory_space<vmem>>, %arg10: memref<64x128xbf16, #tpu.memory_space<vmem>>, %arg11: memref<128x896xbf16, #tpu.memory_space<vmem>>, %arg12: memref<1x128xf32, #tpu.memory_space<vmem>>, %arg13: memref<1x64xf32, #tpu.memory_space<vmem>>, %arg14: memref<1x36xf32, #tpu.memory_space<vmem>>, %arg15: memref<1x18xf32, #tpu.memory_space<vmem>>, %arg16: memref<1x9xf32, #tpu.memory_space<vmem>>, %arg17: memref<1x18xf32, #tpu.memory_space<vmem>>, %arg18: memref<1x36xf32, #tpu.memory_space<vmem>>, %arg19: memref<1x64xf32, #tpu.memory_space<vmem>>, %arg20: memref<1x128xf32, #tpu.memory_space<vmem>>, %arg21: memref<1x896xf32, #tpu.memory_space<vmem>>, %arg22: memref<16x896xf32, #tpu.memory_space<vmem>>) attributes {dimension_semantics = [#tpu.dimension_semantics<parallel>], iteration_bounds = array<i64: 3>, scalar_prefetch = 0 : i64, scratch_operands = 0 : i64, tpu.core_type = #tpu.core_type<tc>, window_params = [{transform_indices = @transform_0, window_bounds = array<i64: 16, 896>}, {pipeline_mode = #tpu.pipeline_mode<synchronous>, transform_indices = @transform_1, window_bounds = array<i64: 896, 128>}, {pipeline_mode = #tpu.pipeline_mode<synchronous>, transform_indices = @transform_2, window_bounds = array<i64: 128, 64>}, {pipeline_mode = #tpu.pipeline_mode<synchronous>, transform_indices = @transform_3, window_bounds = array<i64: 64, 36>}, {pipeline_mode = #tpu.pipeline_mode<synchronous>, transform_indices = @transform_4, window_bounds = array<i64: 36, 18>}, {pipeline_mode = #tpu.pipeline_mode<synchronous>, transform_indices = @transform_5, window_bounds = array<i64: 18, 9>}, {pipeline_mode = #tpu.pipeline_mode<synchronous>, transform_indices = @transform_6, window_bounds = array<i64: 9, 18>}, {pipeline_mode = #tpu.pipeline_mode<synchronous>, transform_indices = @transform_7, window_bounds = array<i64: 18, 36>}, {pipeline_mode = #tpu.pipeline_mode<synchronous>, transform_indices = @transform_8, window_bounds = array<i64: 36, 64>}, {pipeline_mode = #tpu.pipeline_mode<synchronous>, transform_indices = @transform_9, window_bounds = array<i64: 64, 128>}, {pipeline_mode = #tpu.pipeline_mode<synchronous>, transform_indices = @transform_10, window_bounds = array<i64: 128, 896>}, {pipeline_mode = #tpu.pipeline_mode<synchronous>, transform_indices = @transform_11, window_bounds = array<i64: 1, 128>}, {pipeline_mode = #tpu.pipeline_mode<synchronous>, transform_indices = @transform_12, window_bounds = array<i64: 1, 64>}, {pipeline_mode = #tpu.pipeline_mode<synchronous>, transform_indices = @transform_13, window_bounds = array<i64: 1, 36>}, {pipeline_mode = #tpu.pipeline_mode<synchronous>, transform_indices = @transform_14, window_bounds = array<i64: 1, 18>}, {pipeline_mode = #tpu.pipeline_mode<synchronous>, transform_indices = @transform_15, window_bounds = array<i64: 1, 9>}, {pipeline_mode = #tpu.pipeline_mode<synchronous>, transform_indices = @transform_16, window_bounds = array<i64: 1, 18>}, {pipeline_mode = #tpu.pipeline_mode<synchronous>, transform_indices = @transform_17, window_bounds = array<i64: 1, 36>}, {pipeline_mode = #tpu.pipeline_mode<synchronous>, transform_indices = @transform_18, window_bounds = array<i64: 1, 64>}, {pipeline_mode = #tpu.pipeline_mode<synchronous>, transform_indices = @transform_19, window_bounds = array<i64: 1, 128>}, {pipeline_mode = #tpu.pipeline_mode<synchronous>, transform_indices = @transform_20, window_bounds = array<i64: 1, 896>}, {transform_indices = @transform_21, window_bounds = array<i64: 16, 896>}]} {
    %c0 = arith.constant 0 : index
    %c0_0 = arith.constant 0 : index
    %0 = vector.load %arg1[%c0, %c0_0] : memref<16x896xbf16, #tpu.memory_space<vmem>>, vector<16x896xbf16>
    %c0_1 = arith.constant 0 : index
    %c0_2 = arith.constant 0 : index
    %1 = vector.load %arg2[%c0_1, %c0_2] : memref<896x128xbf16, #tpu.memory_space<vmem>>, vector<896x128xbf16>
    %cst = arith.constant dense<0.000000e+00> : vector<16x128xf32>
    %2 = tpu.matmul %0, %1, %cst {dimension_numbers = #tpu.dot_dimension_numbers<[1], [0], [0], [1], [0, 0, 1, 1], [], []>} : vector<16x896xbf16>, vector<896x128xbf16>, vector<16x128xf32> -> vector<16x128xf32>
    %c0_3 = arith.constant 0 : index
    %c0_4 = arith.constant 0 : index
    %3 = vector.load %arg12[%c0_3, %c0_4] : memref<1x128xf32, #tpu.memory_space<vmem>>, vector<1x128xf32>
    %4 = vector.broadcast %3 : vector<1x128xf32> to vector<16x128xf32>
    %5 = arith.addf %2, %4 : vector<16x128xf32>
    %cst_5 = arith.constant 0.000000e+00 : f32
    %6 = vector.broadcast %cst_5 : f32 to vector<16x128xf32>
    %7 = arith.maximumf %5, %6 : vector<16x128xf32>
    %8 = arith.truncf %7 : vector<16x128xf32> to vector<16x128xbf16>
    %c0_6 = arith.constant 0 : index
    %c0_7 = arith.constant 0 : index
    %9 = vector.load %arg3[%c0_6, %c0_7] : memref<128x64xbf16, #tpu.memory_space<vmem>>, vector<128x64xbf16>
    %cst_8 = arith.constant dense<0.000000e+00> : vector<16x64xf32>
    %10 = tpu.matmul %8, %9, %cst_8 {dimension_numbers = #tpu.dot_dimension_numbers<[1], [0], [0], [1], [0, 0, 1, 1], [], []>} : vector<16x128xbf16>, vector<128x64xbf16>, vector<16x64xf32> -> vector<16x64xf32>
    %c0_9 = arith.constant 0 : index
    %c0_10 = arith.constant 0 : index
    %11 = vector.load %arg13[%c0_9, %c0_10] : memref<1x64xf32, #tpu.memory_space<vmem>>, vector<1x64xf32>
    %12 = vector.broadcast %11 : vector<1x64xf32> to vector<16x64xf32>
    %13 = arith.addf %10, %12 : vector<16x64xf32>
    %cst_11 = arith.constant 0.000000e+00 : f32
    %14 = vector.broadcast %cst_11 : f32 to vector<16x64xf32>
    %15 = arith.maximumf %13, %14 : vector<16x64xf32>
    %16 = arith.truncf %15 : vector<16x64xf32> to vector<16x64xbf16>
    %c0_12 = arith.constant 0 : index
    %c0_13 = arith.constant 0 : index
    %17 = vector.load %arg4[%c0_12, %c0_13] : memref<64x36xbf16, #tpu.memory_space<vmem>>, vector<64x36xbf16>
    %cst_14 = arith.constant dense<0.000000e+00> : vector<16x36xf32>
    %18 = tpu.matmul %16, %17, %cst_14 {dimension_numbers = #tpu.dot_dimension_numbers<[1], [0], [0], [1], [0, 0, 1, 1], [], []>} : vector<16x64xbf16>, vector<64x36xbf16>, vector<16x36xf32> -> vector<16x36xf32>
    %c0_15 = arith.constant 0 : index
    %c0_16 = arith.constant 0 : index
    %19 = vector.load %arg14[%c0_15, %c0_16] : memref<1x36xf32, #tpu.memory_space<vmem>>, vector<1x36xf32>
    %20 = vector.broadcast %19 : vector<1x36xf32> to vector<16x36xf32>
    %21 = arith.addf %18, %20 : vector<16x36xf32>
    %cst_17 = arith.constant 0.000000e+00 : f32
    %22 = vector.broadcast %cst_17 : f32 to vector<16x36xf32>
    %23 = arith.maximumf %21, %22 : vector<16x36xf32>
    %24 = arith.truncf %23 : vector<16x36xf32> to vector<16x36xbf16>
    %c0_18 = arith.constant 0 : index
    %c0_19 = arith.constant 0 : index
    %25 = vector.load %arg5[%c0_18, %c0_19] : memref<36x18xbf16, #tpu.memory_space<vmem>>, vector<36x18xbf16>
    %cst_20 = arith.constant dense<0.000000e+00> : vector<16x18xf32>
    %26 = tpu.matmul %24, %25, %cst_20 {dimension_numbers = #tpu.dot_dimension_numbers<[1], [0], [0], [1], [0, 0, 1, 1], [], []>} : vector<16x36xbf16>, vector<36x18xbf16>, vector<16x18xf32> -> vector<16x18xf32>
    %c0_21 = arith.constant 0 : index
    %c0_22 = arith.constant 0 : index
    %27 = vector.load %arg15[%c0_21, %c0_22] : memref<1x18xf32, #tpu.memory_space<vmem>>, vector<1x18xf32>
    %28 = vector.broadcast %27 : vector<1x18xf32> to vector<16x18xf32>
    %29 = arith.addf %26, %28 : vector<16x18xf32>
    %cst_23 = arith.constant 0.000000e+00 : f32
    %30 = vector.broadcast %cst_23 : f32 to vector<16x18xf32>
    %31 = arith.maximumf %29, %30 : vector<16x18xf32>
    %32 = arith.truncf %31 : vector<16x18xf32> to vector<16x18xbf16>
    %c0_24 = arith.constant 0 : index
    %c0_25 = arith.constant 0 : index
    %33 = vector.load %arg6[%c0_24, %c0_25] : memref<18x9xbf16, #tpu.memory_space<vmem>>, vector<18x9xbf16>
    %cst_26 = arith.constant dense<0.000000e+00> : vector<16x9xf32>
    %34 = tpu.matmul %32, %33, %cst_26 {dimension_numbers = #tpu.dot_dimension_numbers<[1], [0], [0], [1], [0, 0, 1, 1], [], []>} : vector<16x18xbf16>, vector<18x9xbf16>, vector<16x9xf32> -> vector<16x9xf32>
    %c0_27 = arith.constant 0 : index
    %c0_28 = arith.constant 0 : index
    %35 = vector.load %arg16[%c0_27, %c0_28] : memref<1x9xf32, #tpu.memory_space<vmem>>, vector<1x9xf32>
    %36 = vector.broadcast %35 : vector<1x9xf32> to vector<16x9xf32>
    %37 = arith.addf %34, %36 : vector<16x9xf32>
    %38 = arith.truncf %37 : vector<16x9xf32> to vector<16x9xbf16>
    %c0_29 = arith.constant 0 : index
    %c0_30 = arith.constant 0 : index
    %39 = vector.load %arg7[%c0_29, %c0_30] : memref<9x18xbf16, #tpu.memory_space<vmem>>, vector<9x18xbf16>
    %cst_31 = arith.constant dense<0.000000e+00> : vector<16x18xf32>
    %40 = tpu.matmul %38, %39, %cst_31 {dimension_numbers = #tpu.dot_dimension_numbers<[1], [0], [0], [1], [0, 0, 1, 1], [], []>} : vector<16x9xbf16>, vector<9x18xbf16>, vector<16x18xf32> -> vector<16x18xf32>
    %c0_32 = arith.constant 0 : index
    %c0_33 = arith.constant 0 : index
    %41 = vector.load %arg17[%c0_32, %c0_33] : memref<1x18xf32, #tpu.memory_space<vmem>>, vector<1x18xf32>
    %42 = vector.broadcast %41 : vector<1x18xf32> to vector<16x18xf32>
    %43 = arith.addf %40, %42 : vector<16x18xf32>
    %cst_34 = arith.constant 0.000000e+00 : f32
    %44 = vector.broadcast %cst_34 : f32 to vector<16x18xf32>
    %45 = arith.maximumf %43, %44 : vector<16x18xf32>
    %46 = arith.truncf %45 : vector<16x18xf32> to vector<16x18xbf16>
    %c0_35 = arith.constant 0 : index
    %c0_36 = arith.constant 0 : index
    %47 = vector.load %arg8[%c0_35, %c0_36] : memref<18x36xbf16, #tpu.memory_space<vmem>>, vector<18x36xbf16>
    %cst_37 = arith.constant dense<0.000000e+00> : vector<16x36xf32>
    %48 = tpu.matmul %46, %47, %cst_37 {dimension_numbers = #tpu.dot_dimension_numbers<[1], [0], [0], [1], [0, 0, 1, 1], [], []>} : vector<16x18xbf16>, vector<18x36xbf16>, vector<16x36xf32> -> vector<16x36xf32>
    %c0_38 = arith.constant 0 : index
    %c0_39 = arith.constant 0 : index
    %49 = vector.load %arg18[%c0_38, %c0_39] : memref<1x36xf32, #tpu.memory_space<vmem>>, vector<1x36xf32>
    %50 = vector.broadcast %49 : vector<1x36xf32> to vector<16x36xf32>
    %51 = arith.addf %48, %50 : vector<16x36xf32>
    %cst_40 = arith.constant 0.000000e+00 : f32
    %52 = vector.broadcast %cst_40 : f32 to vector<16x36xf32>
    %53 = arith.maximumf %51, %52 : vector<16x36xf32>
    %54 = arith.truncf %53 : vector<16x36xf32> to vector<16x36xbf16>
    %c0_41 = arith.constant 0 : index
    %c0_42 = arith.constant 0 : index
    %55 = vector.load %arg9[%c0_41, %c0_42] : memref<36x64xbf16, #tpu.memory_space<vmem>>, vector<36x64xbf16>
    %cst_43 = arith.constant dense<0.000000e+00> : vector<16x64xf32>
    %56 = tpu.matmul %54, %55, %cst_43 {dimension_numbers = #tpu.dot_dimension_numbers<[1], [0], [0], [1], [0, 0, 1, 1], [], []>} : vector<16x36xbf16>, vector<36x64xbf16>, vector<16x64xf32> -> vector<16x64xf32>
    %c0_44 = arith.constant 0 : index
    %c0_45 = arith.constant 0 : index
    %57 = vector.load %arg19[%c0_44, %c0_45] : memref<1x64xf32, #tpu.memory_space<vmem>>, vector<1x64xf32>
    %58 = vector.broadcast %57 : vector<1x64xf32> to vector<16x64xf32>
    %59 = arith.addf %56, %58 : vector<16x64xf32>
    %cst_46 = arith.constant 0.000000e+00 : f32
    %60 = vector.broadcast %cst_46 : f32 to vector<16x64xf32>
    %61 = arith.maximumf %59, %60 : vector<16x64xf32>
    %62 = arith.truncf %61 : vector<16x64xf32> to vector<16x64xbf16>
    %c0_47 = arith.constant 0 : index
    %c0_48 = arith.constant 0 : index
    %63 = vector.load %arg10[%c0_47, %c0_48] : memref<64x128xbf16, #tpu.memory_space<vmem>>, vector<64x128xbf16>
    %cst_49 = arith.constant dense<0.000000e+00> : vector<16x128xf32>
    %64 = tpu.matmul %62, %63, %cst_49 {dimension_numbers = #tpu.dot_dimension_numbers<[1], [0], [0], [1], [0, 0, 1, 1], [], []>} : vector<16x64xbf16>, vector<64x128xbf16>, vector<16x128xf32> -> vector<16x128xf32>
    %c0_50 = arith.constant 0 : index
    %c0_51 = arith.constant 0 : index
    %65 = vector.load %arg20[%c0_50, %c0_51] : memref<1x128xf32, #tpu.memory_space<vmem>>, vector<1x128xf32>
    %66 = vector.broadcast %65 : vector<1x128xf32> to vector<16x128xf32>
    %67 = arith.addf %64, %66 : vector<16x128xf32>
    %cst_52 = arith.constant 0.000000e+00 : f32
    %68 = vector.broadcast %cst_52 : f32 to vector<16x128xf32>
    %69 = arith.maximumf %67, %68 : vector<16x128xf32>
    %70 = arith.truncf %69 : vector<16x128xf32> to vector<16x128xbf16>
    %c0_53 = arith.constant 0 : index
    %c0_54 = arith.constant 0 : index
    %71 = vector.load %arg11[%c0_53, %c0_54] : memref<128x896xbf16, #tpu.memory_space<vmem>>, vector<128x896xbf16>
    %cst_55 = arith.constant dense<0.000000e+00> : vector<16x896xf32>
    %72 = tpu.matmul %70, %71, %cst_55 {dimension_numbers = #tpu.dot_dimension_numbers<[1], [0], [0], [1], [0, 0, 1, 1], [], []>} : vector<16x128xbf16>, vector<128x896xbf16>, vector<16x896xf32> -> vector<16x896xf32>
    %c0_56 = arith.constant 0 : index
    %c0_57 = arith.constant 0 : index
    %73 = vector.load %arg21[%c0_56, %c0_57] : memref<1x896xf32, #tpu.memory_space<vmem>>, vector<1x896xf32>
    %74 = vector.broadcast %73 : vector<1x896xf32> to vector<16x896xf32>
    %75 = arith.addf %72, %74 : vector<16x896xf32>
    %76 = arith.negf %75 : vector<16x896xf32>
    %77 = math.exp %76 : vector<16x896xf32>
    %cst_58 = arith.constant 1.000000e+00 : f32
    %78 = vector.broadcast %cst_58 : f32 to vector<16x896xf32>
    %79 = arith.addf %78, %77 : vector<16x896xf32>
    %80 = arith.divf %78, %79 : vector<16x896xf32>
    %c0_59 = arith.constant 0 : index
    %c0_60 = arith.constant 0 : index
    %81 = vector.load %arg22[%c0_59, %c0_60] : memref<16x896xf32, #tpu.memory_space<vmem>>, vector<16x896xf32>
    tpu.vector_store %arg22[%c0_59, %c0_60], %80 {strides = array<i32>} : memref<16x896xf32, #tpu.memory_space<vmem>>, vector<16x896xf32>,
    return
  }
  func.func @transform_0(%arg0: i32) -> (i32, i32) {
    %c0_i32 = arith.constant 0 : i32
    %c0_i32_0 = arith.constant 0 : i32
    return %arg0, %c0_i32 : i32, i32
  }
  func.func @transform_1(%arg0: i32) -> (i32, i32) {
    %c0_i32 = arith.constant 0 : i32
    %c0_i32_0 = arith.constant 0 : i32
    %c0_i32_1 = arith.constant 0 : i32
    return %c0_i32, %c0_i32_0 : i32, i32
  }
  func.func @transform_2(%arg0: i32) -> (i32, i32) {
    %c0_i32 = arith.constant 0 : i32
    %c0_i32_0 = arith.constant 0 : i32
    %c0_i32_1 = arith.constant 0 : i32
    return %c0_i32, %c0_i32_0 : i32, i32
  }
  func.func @transform_3(%arg0: i32) -> (i32, i32) {
    %c0_i32 = arith.constant 0 : i32
    %c0_i32_0 = arith.constant 0 : i32
    %c0_i32_1 = arith.constant 0 : i32
    return %c0_i32, %c0_i32_0 : i32, i32
  }
  func.func @transform_4(%arg0: i32) -> (i32, i32) {
    %c0_i32 = arith.constant 0 : i32
    %c0_i32_0 = arith.constant 0 : i32
    %c0_i32_1 = arith.constant 0 : i32
    return %c0_i32, %c0_i32_0 : i32, i32
  }
  func.func @transform_5(%arg0: i32) -> (i32, i32) {
    %c0_i32 = arith.constant 0 : i32
    %c0_i32_0 = arith.constant 0 : i32
    %c0_i32_1 = arith.constant 0 : i32
    return %c0_i32, %c0_i32_0 : i32, i32
  }
  func.func @transform_6(%arg0: i32) -> (i32, i32) {
    %c0_i32 = arith.constant 0 : i32
    %c0_i32_0 = arith.constant 0 : i32
    %c0_i32_1 = arith.constant 0 : i32
    return %c0_i32, %c0_i32_0 : i32, i32
  }
  func.func @transform_7(%arg0: i32) -> (i32, i32) {
    %c0_i32 = arith.constant 0 : i32
    %c0_i32_0 = arith.constant 0 : i32
    %c0_i32_1 = arith.constant 0 : i32
    return %c0_i32, %c0_i32_0 : i32, i32
  }
  func.func @transform_8(%arg0: i32) -> (i32, i32) {
    %c0_i32 = arith.constant 0 : i32
    %c0_i32_0 = arith.constant 0 : i32
    %c0_i32_1 = arith.constant 0 : i32
    return %c0_i32, %c0_i32_0 : i32, i32
  }
  func.func @transform_9(%arg0: i32) -> (i32, i32) {
    %c0_i32 = arith.constant 0 : i32
    %c0_i32_0 = arith.constant 0 : i32
    %c0_i32_1 = arith.constant 0 : i32
    return %c0_i32, %c0_i32_0 : i32, i32
  }
  func.func @transform_10(%arg0: i32) -> (i32, i32) {
    %c0_i32 = arith.constant 0 : i32
    %c0_i32_0 = arith.constant 0 : i32
    %c0_i32_1 = arith.constant 0 : i32
    return %c0_i32, %c0_i32_0 : i32, i32
  }
  func.func @transform_11(%arg0: i32) -> (i32, i32) {
    %c0_i32 = arith.constant 0 : i32
    %c0_i32_0 = arith.constant 0 : i32
    %c0_i32_1 = arith.constant 0 : i32
    return %c0_i32, %c0_i32_0 : i32, i32
  }
  func.func @transform_12(%arg0: i32) -> (i32, i32) {
    %c0_i32 = arith.constant 0 : i32
    %c0_i32_0 = arith.constant 0 : i32
    %c0_i32_1 = arith.constant 0 : i32
    return %c0_i32, %c0_i32_0 : i32, i32
  }
  func.func @transform_13(%arg0: i32) -> (i32, i32) {
    %c0_i32 = arith.constant 0 : i32
    %c0_i32_0 = arith.constant 0 : i32
    %c0_i32_1 = arith.constant 0 : i32
    return %c0_i32, %c0_i32_0 : i32, i32
  }
  func.func @transform_14(%arg0: i32) -> (i32, i32) {
    %c0_i32 = arith.constant 0 : i32
    %c0_i32_0 = arith.constant 0 : i32
    %c0_i32_1 = arith.constant 0 : i32
    return %c0_i32, %c0_i32_0 : i32, i32
  }
  func.func @transform_15(%arg0: i32) -> (i32, i32) {
    %c0_i32 = arith.constant 0 : i32
    %c0_i32_0 = arith.constant 0 : i32
    %c0_i32_1 = arith.constant 0 : i32
    return %c0_i32, %c0_i32_0 : i32, i32
  }
  func.func @transform_16(%arg0: i32) -> (i32, i32) {
    %c0_i32 = arith.constant 0 : i32
    %c0_i32_0 = arith.constant 0 : i32
    %c0_i32_1 = arith.constant 0 : i32
    return %c0_i32, %c0_i32_0 : i32, i32
  }
  func.func @transform_17(%arg0: i32) -> (i32, i32) {
    %c0_i32 = arith.constant 0 : i32
    %c0_i32_0 = arith.constant 0 : i32
    %c0_i32_1 = arith.constant 0 : i32
    return %c0_i32, %c0_i32_0 : i32, i32
  }
  func.func @transform_18(%arg0: i32) -> (i32, i32) {
    %c0_i32 = arith.constant 0 : i32
    %c0_i32_0 = arith.constant 0 : i32
    %c0_i32_1 = arith.constant 0 : i32
    return %c0_i32, %c0_i32_0 : i32, i32
  }
  func.func @transform_19(%arg0: i32) -> (i32, i32) {
    %c0_i32 = arith.constant 0 : i32
    %c0_i32_0 = arith.constant 0 : i32
    %c0_i32_1 = arith.constant 0 : i32
    return %c0_i32, %c0_i32_0 : i32, i32
  }
  func.func @transform_20(%arg0: i32) -> (i32, i32) {
    %c0_i32 = arith.constant 0 : i32
    %c0_i32_0 = arith.constant 0 : i32
    %c0_i32_1 = arith.constant 0 : i32
    return %c0_i32, %c0_i32_0 : i32, i32
  }
  func.func @transform_21(%arg0: i32) -> (i32, i32) {
    %c0_i32 = arith.constant 0 : i32
    %c0_i32_0 = arith.constant 0 : i32
    return %arg0, %c0_i32 : i32, i32
  }
}

</mosaic_0001>

<llo_original>
// kernel: tpu_custom_call.1
$region0: #{tpu_custom_call.1}
  #allocation0 [shape = 'u32[]', space=smem, size = 0x4, offset = 0x4, fixed_abs, tag = 'smem constant byte address 0x4 - core index']
  #allocation1 [shape = 'u32[144,128]{1,0:T(1,128)}', space=vmem, size = 0x12000, scoped, tag = 'internal scratch']
  %s0 = inlined_call_operand.vmem [shape: bf16[48,896], index: 0, kind: input, shape index: {}]
  %s1 = inlined_call_operand.hbm [shape: bf16[896,128], index: 1, kind: input, shape index: {}]
  %s2 = inlined_call_operand.vmem [shape: bf16[128,64], index: 2, kind: input, shape index: {}]
  %s3 = inlined_call_operand.vmem [shape: bf16[64,36], index: 3, kind: input, shape index: {}]
  %s4 = inlined_call_operand.vmem [shape: bf16[36,18], index: 4, kind: input, shape index: {}]
  %s5 = inlined_call_operand.vmem [shape: bf16[18,9], index: 5, kind: input, shape index: {}]
  %s6 = inlined_call_operand.hbm [shape: bf16[9,18], index: 6, kind: input, shape index: {}]
  %s7 = inlined_call_operand.hbm [shape: bf16[18,36], index: 7, kind: input, shape index: {}]
  %s8 = inlined_call_operand.hbm [shape: bf16[36,64], index: 8, kind: input, shape index: {}]
  %s9 = inlined_call_operand.hbm [shape: bf16[64,128], index: 9, kind: input, shape index: {}]
  %s10 = inlined_call_operand.hbm [shape: bf16[128,896], index: 10, kind: input, shape index: {}]
  %s11 = inlined_call_operand.vmem [shape: f32[1,128], index: 11, kind: input, shape index: {}]
  %s12 = inlined_call_operand.vmem [shape: f32[1,64], index: 12, kind: input, shape index: {}]
  %s13 = inlined_call_operand.vmem [shape: f32[1,36], index: 13, kind: input, shape index: {}]
  %s14 = inlined_call_operand.vmem [shape: f32[1,18], index: 14, kind: input, shape index: {}]
  %s15 = inlined_call_operand.vmem [shape: f32[1,9], index: 15, kind: input, shape index: {}]
  %s16 = inlined_call_operand.vmem [shape: f32[1,18], index: 16, kind: input, shape index: {}]
  %s17 = inlined_call_operand.vmem [shape: f32[1,36], index: 17, kind: input, shape index: {}]
  %s18 = inlined_call_operand.vmem [shape: f32[1,64], index: 18, kind: input, shape index: {}]
  %s19 = inlined_call_operand.vmem [shape: f32[1,128], index: 19, kind: input, shape index: {}]
  %s20 = inlined_call_operand.vmem [shape: f32[1,896], index: 20, kind: input, shape index: {}]
  %s21 = inlined_call_operand.hbm [shape: f32[48,896], index: 21, kind: output, shape index: {}]
  %s22 = sld [smem:[#allocation0]]
  $region141: #{tpu_custom_call.1} parent=0
    _
  %s24 = ssub.s32 1, %s22
  %s25 = scalar_select 0, %s24, %s22
  $region1: #{tpu_custom_call.1} parent=0
    #allocation2 [shape = 'u8[229376]{0}', space=vmem, size = 0x38000, scoped, tag = 'input window, operand 1, single buffered']
    #allocation3 [shape = 's32[2]{0}', space=sflag, size = 0x8, scoped, tag = 'scoped memory for tpu_custom_call.1']
    #allocation4 [shape = 's32[2]{0}', space=sflag, size = 0x8, scoped, tag = 'scoped memory for tpu_custom_call.1']
    #allocation5 [shape = 'u8[4096]{0}', space=vmem, size = 0x1000, scoped, tag = 'input window, operand 6, single buffered']
    #allocation6 [shape = 's32[1]{0}', space=sflag, size = 0x4, scoped, tag = 'scoped memory for tpu_custom_call.1']
    #allocation7 [shape = 'u8[6144]{0}', space=vmem, size = 0x1800, scoped, tag = 'input window, operand 7, single buffered']
    #allocation8 [shape = 'u8[10240]{0}', space=vmem, size = 0x2800, scoped, tag = 'input window, operand 8, single buffered']
    #allocation9 [shape = 's32[1]{0}', space=sflag, size = 0x4, scoped, tag = 'scoped memory for tpu_custom_call.1']
    #allocation10 [shape = 'u8[16384]{0}', space=vmem, size = 0x4000, scoped, tag = 'input window, operand 9, single buffered']
    #allocation11 [shape = 'u8[229376]{0}', space=vmem, size = 0x38000, scoped, tag = 'input window, operand 10, single buffered']
    #allocation12 [shape = 's32[1]{0}', space=sflag, size = 0x4, scoped, tag = 'scoped memory for tpu_custom_call.1']
    #allocation13 [shape = 'u8[114688]{0}', space=vmem, size = 0x1c000, scoped, tag = 'output window, operand 0']
    %26 = vsyncpa [#allocation3], 0
    %27 = vsyncpa [#allocation6], 0
    %28 = vsyncpa [#allocation9], 0
    %29 = vsyncpa [#allocation12], 0
    %30 = vsyncpa [#allocation4], 0
    %s31 = scalar_lea.sflag [#allocation4], 1
    %32 = vsyncpa %s31, 0
    loop: start=0, step=1, limit=5
    $region2: #{tpu_custom_call.1} parent=1 // loop_pre_header
      _
    $region3: #{tpu_custom_call.1} parent=1 // loop_header
      %s34 = sphi 0, %s38
      %p35 = scmp.ge.s32.totalorder %s34, 5
      %s44 = sphi 0, %s46
      %s47 = sphi 0, %s44
      %s48 = sphi 0, %s47
      %s64 = sphi 0, %s48
      %s68 = sphi 0, %s68
      %s70 = sphi 0, %s68
      %s71 = sphi 0, %s70
      %s85 = sphi 0, %s71
      %s89 = sphi 0, %s89
      %s91 = sphi 0, %s89
      %s92 = sphi 0, %s91
      %s106 = sphi 0, %s92
      %s110 = sphi 0, %s110
      %s112 = sphi 0, %s110
      %s113 = sphi 0, %s112
      %s127 = sphi 0, %s113
      %s131 = sphi 0, %s131
      %s133 = sphi 0, %s131
      %s134 = sphi 0, %s133
      %s148 = sphi 0, %s134
      %s152 = sphi 0, %s152
      %s154 = sphi 0, %s152
      %s155 = sphi 0, %s154
      %s169 = sphi 0, %s155
      %s173 = sphi 0, %s173
      %s175 = sphi 0, %s173
      %s176 = sphi 0, %s175
      %s190 = sphi 0, %s176
      %s194 = sphi 0, %s194
      %s196 = sphi 0, %s194
      %s197 = sphi 0, %s196
      %s211 = sphi 0, %s197
      %s215 = sphi 0, %s215
      %s217 = sphi 0, %s215
      %s218 = sphi 0, %s217
      %s232 = sphi 0, %s218
      %s236 = sphi 0, %s236
      %s238 = sphi 0, %s236
      %s239 = sphi 0, %s238
      %s253 = sphi 0, %s239
      %s257 = sphi 0, %s257
      %s259 = sphi 0, %s257
      %s260 = sphi 0, %s259
      %s274 = sphi 0, %s260
      %s278 = sphi 0, %s278
      %s280 = sphi 0, %s278
      %s281 = sphi 0, %s280
      %s295 = sphi 0, %s281
      %s299 = sphi 0, %s299
      %s301 = sphi 0, %s299
      %s302 = sphi 0, %s301
      %s316 = sphi 0, %s302
      %s320 = sphi 0, %s320
      %s322 = sphi 0, %s320
      %s323 = sphi 0, %s322
      %s337 = sphi 0, %s323
      %s341 = sphi 0, %s341
      %s343 = sphi 0, %s341
      %s344 = sphi 0, %s343
      %s358 = sphi 0, %s344
      %s362 = sphi 0, %s362
      %s364 = sphi 0, %s362
      %s365 = sphi 0, %s364
      %s379 = sphi 0, %s365
      %s383 = sphi 0, %s383
      %s385 = sphi 0, %s383
      %s386 = sphi 0, %s385
      %s400 = sphi 0, %s386
      %s404 = sphi 0, %s404
      %s406 = sphi 0, %s404
      %s407 = sphi 0, %s406
      %s421 = sphi 0, %s407
      %s425 = sphi 0, %s425
      %s427 = sphi 0, %s425
      %s428 = sphi 0, %s427
      %s442 = sphi 0, %s428
      %s446 = sphi 0, %s446
      %s448 = sphi 0, %s446
      %s449 = sphi 0, %s448
      %s463 = sphi 0, %s449
      %s467 = sphi 0, %s467
      %s469 = sphi 0, %s467
      %s470 = sphi 0, %s469
      %s484 = sphi 0, %s470
      %s490 = sphi 0, %s492
      %s493 = sphi 0, %s490
      %s494 = sphi 0, %s493
      %s510 = sphi 0, %s494
    $region4: #{tpu_custom_call.1} parent=1 // loop_header_branch
      %37 = sbr.rel (%p35) target = $region8
    $region5: #{tpu_custom_call.1} parent=1 // loop_body
      %s39 = ssub.s32 %s34, 1
      %s40 = ssub.s32 %s34, 2
      %s41 = sadd.s32 %s34, 1
      %s42 = ssub.s32 %s34, %s41
      %p43 = scmp.eq.s32.totalorder %s42, 0
      %s45 = sadd.s32 %s44, 1
      %s46 = scalar_select %p43, %s44, %s45
      %p49 = pneg %p43
      %p50 = scmp.eq.s32.totalorder %s34, 2
      %p51 = por %p49, %p50
      %p52 = scmp.ne.s32.totalorder %s44, %s47
      %p53 = scmp.eq.s32.totalorder %s34, 0
      %p54 = por %p52, %p53
      %p55 = scmp.ne.s32.totalorder %s44, %s47
      %p56 = scmp.eq.s32.totalorder %s39, 2
      %p57 = por %p55, %p56
      %p58 = scmp.ne.s32.totalorder %s47, %s48
      %p59 = scmp.eq.s32.totalorder %s39, 0
      %p60 = por %p58, %p59
      %p61 = scmp.ne.s32.totalorder %s47, %s48
      %p62 = scmp.eq.s32.totalorder %s40, 2
      %p63 = por %p61, %p62
      %p65 = scmp.ne.s32.totalorder %s48, %s64
      %p66 = scmp.eq.s32.totalorder %s40, 0
      %p67 = por %p65, %p66
      %s69 = sadd.s32 %s68, 1
      %p72 = scmp.eq.s32.totalorder %s34, 2
      %p73 = scmp.ne.s32.totalorder %s68, %s70
      %p74 = scmp.eq.s32.totalorder %s34, 0
      %p75 = por %p73, %p74
      %p76 = scmp.ne.s32.totalorder %s68, %s70
      %p77 = scmp.eq.s32.totalorder %s39, 2
      %p78 = por %p76, %p77
      %p79 = scmp.ne.s32.totalorder %s70, %s71
      %p80 = scmp.eq.s32.totalorder %s39, 0
      %p81 = por %p79, %p80
      %p82 = scmp.ne.s32.totalorder %s70, %s71
      %p83 = scmp.eq.s32.totalorder %s40, 2
      %p84 = por %p82, %p83
      %p86 = scmp.ne.s32.totalorder %s71, %s85
      %p87 = scmp.eq.s32.totalorder %s40, 0
      %p88 = por %p86, %p87
      %s90 = sadd.s32 %s89, 1
      %p93 = scmp.eq.s32.totalorder %s34, 2
      %p94 = scmp.ne.s32.totalorder %s89, %s91
      %p95 = scmp.eq.s32.totalorder %s34, 0
      %p96 = por %p94, %p95
      %p97 = scmp.ne.s32.totalorder %s89, %s91
      %p98 = scmp.eq.s32.totalorder %s39, 2
      %p99 = por %p97, %p98
      %p100 = scmp.ne.s32.totalorder %s91, %s92
      %p101 = scmp.eq.s32.totalorder %s39, 0
      %p102 = por %p100, %p101
      %p103 = scmp.ne.s32.totalorder %s91, %s92
      %p104 = scmp.eq.s32.totalorder %s40, 2
      %p105 = por %p103, %p104
      %p107 = scmp.ne.s32.totalorder %s92, %s106
      %p108 = scmp.eq.s32.totalorder %s40, 0
      %p109 = por %p107, %p108
      %s111 = sadd.s32 %s110, 1
      %p114 = scmp.eq.s32.totalorder %s34, 2
      %p115 = scmp.ne.s32.totalorder %s110, %s112
      %p116 = scmp.eq.s32.totalorder %s34, 0
      %p117 = por %p115, %p116
      %p118 = scmp.ne.s32.totalorder %s110, %s112
      %p119 = scmp.eq.s32.totalorder %s39, 2
      %p120 = por %p118, %p119
      %p121 = scmp.ne.s32.totalorder %s112, %s113
      %p122 = scmp.eq.s32.totalorder %s39, 0
      %p123 = por %p121, %p122
      %p124 = scmp.ne.s32.totalorder %s112, %s113
      %p125 = scmp.eq.s32.totalorder %s40, 2
      %p126 = por %p124, %p125
      %p128 = scmp.ne.s32.totalorder %s113, %s127
      %p129 = scmp.eq.s32.totalorder %s40, 0
      %p130 = por %p128, %p129
      %s132 = sadd.s32 %s131, 1
      %p135 = scmp.eq.s32.totalorder %s34, 2
      %p136 = scmp.ne.s32.totalorder %s131, %s133
      %p137 = scmp.eq.s32.totalorder %s34, 0
      %p138 = por %p136, %p137
      %p139 = scmp.ne.s32.totalorder %s131, %s133
      %p140 = scmp.eq.s32.totalorder %s39, 2
      %p141 = por %p139, %p140
      %p142 = scmp.ne.s32.totalorder %s133, %s134
      %p143 = scmp.eq.s32.totalorder %s39, 0
      %p144 = por %p142, %p143
      %p145 = scmp.ne.s32.totalorder %s133, %s134
      %p146 = scmp.eq.s32.totalorder %s40, 2
      %p147 = por %p145, %p146
      %p149 = scmp.ne.s32.totalorder %s134, %s148
      %p150 = scmp.eq.s32.totalorder %s40, 0
      %p151 = por %p149, %p150
      %s153 = sadd.s32 %s152, 1
      %p156 = scmp.eq.s32.totalorder %s34, 2
      %p157 = scmp.ne.s32.totalorder %s152, %s154
      %p158 = scmp.eq.s32.totalorder %s34, 0
      %p159 = por %p157, %p158
      %p160 = scmp.ne.s32.totalorder %s152, %s154
      %p161 = scmp.eq.s32.totalorder %s39, 2
      %p162 = por %p160, %p161
      %p163 = scmp.ne.s32.totalorder %s154, %s155
      %p164 = scmp.eq.s32.totalorder %s39, 0
      %p165 = por %p163, %p164
      %p166 = scmp.ne.s32.totalorder %s154, %s155
      %p167 = scmp.eq.s32.totalorder %s40, 2
      %p168 = por %p166, %p167
      %p170 = scmp.ne.s32.totalorder %s155, %s169
      %p171 = scmp.eq.s32.totalorder %s40, 0
      %p172 = por %p170, %p171
      %s174 = sadd.s32 %s173, 1
      %p177 = scmp.eq.s32.totalorder %s34, 2
      %p178 = scmp.ne.s32.totalorder %s173, %s175
      %p179 = scmp.eq.s32.totalorder %s34, 0
      %p180 = por %p178, %p179
      %p181 = scmp.ne.s32.totalorder %s173, %s175
      %p182 = scmp.eq.s32.totalorder %s39, 2
      %p183 = por %p181, %p182
      %p184 = scmp.ne.s32.totalorder %s175, %s176
      %p185 = scmp.eq.s32.totalorder %s39, 0
      %p186 = por %p184, %p185
      %p187 = scmp.ne.s32.totalorder %s175, %s176
      %p188 = scmp.eq.s32.totalorder %s40, 2
      %p189 = por %p187, %p188
      %p191 = scmp.ne.s32.totalorder %s176, %s190
      %p192 = scmp.eq.s32.totalorder %s40, 0
      %p193 = por %p191, %p192
      %s195 = sadd.s32 %s194, 1
      %p198 = scmp.eq.s32.totalorder %s34, 2
      %p199 = scmp.ne.s32.totalorder %s194, %s196
      %p200 = scmp.eq.s32.totalorder %s34, 0
      %p201 = por %p199, %p200
      %p202 = scmp.ne.s32.totalorder %s194, %s196
      %p203 = scmp.eq.s32.totalorder %s39, 2
      %p204 = por %p202, %p203
      %p205 = scmp.ne.s32.totalorder %s196, %s197
      %p206 = scmp.eq.s32.totalorder %s39, 0
      %p207 = por %p205, %p206
      %p208 = scmp.ne.s32.totalorder %s196, %s197
      %p209 = scmp.eq.s32.totalorder %s40, 2
      %p210 = por %p208, %p209
      %p212 = scmp.ne.s32.totalorder %s197, %s211
      %p213 = scmp.eq.s32.totalorder %s40, 0
      %p214 = por %p212, %p213
      %s216 = sadd.s32 %s215, 1
      %p219 = scmp.eq.s32.totalorder %s34, 2
      %p220 = scmp.ne.s32.totalorder %s215, %s217
      %p221 = scmp.eq.s32.totalorder %s34, 0
      %p222 = por %p220, %p221
      %p223 = scmp.ne.s32.totalorder %s215, %s217
      %p224 = scmp.eq.s32.totalorder %s39, 2
      %p225 = por %p223, %p224
      %p226 = scmp.ne.s32.totalorder %s217, %s218
      %p227 = scmp.eq.s32.totalorder %s39, 0
      %p228 = por %p226, %p227
      %p229 = scmp.ne.s32.totalorder %s217, %s218
      %p230 = scmp.eq.s32.totalorder %s40, 2
      %p231 = por %p229, %p230
      %p233 = scmp.ne.s32.totalorder %s218, %s232
      %p234 = scmp.eq.s32.totalorder %s40, 0
      %p235 = por %p233, %p234
      %s237 = sadd.s32 %s236, 1
      %p240 = scmp.eq.s32.totalorder %s34, 2
      %p241 = scmp.ne.s32.totalorder %s236, %s238
      %p242 = scmp.eq.s32.totalorder %s34, 0
      %p243 = por %p241, %p242
      %p244 = scmp.ne.s32.totalorder %s236, %s238
      %p245 = scmp.eq.s32.totalorder %s39, 2
      %p246 = por %p244, %p245
      %p247 = scmp.ne.s32.totalorder %s238, %s239
      %p248 = scmp.eq.s32.totalorder %s39, 0
      %p249 = por %p247, %p248
      %p250 = scmp.ne.s32.totalorder %s238, %s239
      %p251 = scmp.eq.s32.totalorder %s40, 2
      %p252 = por %p250, %p251
      %p254 = scmp.ne.s32.totalorder %s239, %s253
      %p255 = scmp.eq.s32.totalorder %s40, 0
      %p256 = por %p254, %p255
      %s258 = sadd.s32 %s257, 1
      %p261 = scmp.eq.s32.totalorder %s34, 2
      %p262 = scmp.ne.s32.totalorder %s257, %s259
      %p263 = scmp.eq.s32.totalorder %s34, 0
      %p264 = por %p262, %p263
      %p265 = scmp.ne.s32.totalorder %s257, %s259
      %p266 = scmp.eq.s32.totalorder %s39, 2
      %p267 = por %p265, %p266
      %p268 = scmp.ne.s32.totalorder %s259, %s260
      %p269 = scmp.eq.s32.totalorder %s39, 0
      %p270 = por %p268, %p269
      %p271 = scmp.ne.s32.totalorder %s259, %s260
      %p272 = scmp.eq.s32.totalorder %s40, 2
      %p273 = por %p271, %p272
      %p275 = scmp.ne.s32.totalorder %s260, %s274
      %p276 = scmp.eq.s32.totalorder %s40, 0
      %p277 = por %p275, %p276
      %s279 = sadd.s32 %s278, 1
      %p282 = scmp.eq.s32.totalorder %s34, 2
      %p283 = scmp.ne.s32.totalorder %s278, %s280
      %p284 = scmp.eq.s32.totalorder %s34, 0
      %p285 = por %p283, %p284
      %p286 = scmp.ne.s32.totalorder %s278, %s280
      %p287 = scmp.eq.s32.totalorder %s39, 2
      %p288 = por %p286, %p287
      %p289 = scmp.ne.s32.totalorder %s280, %s281
      %p290 = scmp.eq.s32.totalorder %s39, 0
      %p291 = por %p289, %p290
      %p292 = scmp.ne.s32.totalorder %s280, %s281
      %p293 = scmp.eq.s32.totalorder %s40, 2
      %p294 = por %p292, %p293
      %p296 = scmp.ne.s32.totalorder %s281, %s295
      %p297 = scmp.eq.s32.totalorder %s40, 0
      %p298 = por %p296, %p297
      %s300 = sadd.s32 %s299, 1
      %p303 = scmp.eq.s32.totalorder %s34, 2
      %p304 = scmp.ne.s32.totalorder %s299, %s301
      %p305 = scmp.eq.s32.totalorder %s34, 0
      %p306 = por %p304, %p305
      %p307 = scmp.ne.s32.totalorder %s299, %s301
      %p308 = scmp.eq.s32.totalorder %s39, 2
      %p309 = por %p307, %p308
      %p310 = scmp.ne.s32.totalorder %s301, %s302
      %p311 = scmp.eq.s32.totalorder %s39, 0
      %p312 = por %p310, %p311
      %p313 = scmp.ne.s32.totalorder %s301, %s302
      %p314 = scmp.eq.s32.totalorder %s40, 2
      %p315 = por %p313, %p314
      %p317 = scmp.ne.s32.totalorder %s302, %s316
      %p318 = scmp.eq.s32.totalorder %s40, 0
      %p319 = por %p317, %p318
      %s321 = sadd.s32 %s320, 1
      %p324 = scmp.eq.s32.totalorder %s34, 2
      %p325 = scmp.ne.s32.totalorder %s320, %s322
      %p326 = scmp.eq.s32.totalorder %s34, 0
      %p327 = por %p325, %p326
      %p328 = scmp.ne.s32.totalorder %s320, %s322
      %p329 = scmp.eq.s32.totalorder %s39, 2
      %p330 = por %p328, %p329
      %p331 = scmp.ne.s32.totalorder %s322, %s323
      %p332 = scmp.eq.s32.totalorder %s39, 0
      %p333 = por %p331, %p332
      %p334 = scmp.ne.s32.totalorder %s322, %s323
      %p335 = scmp.eq.s32.totalorder %s40, 2
      %p336 = por %p334, %p335
      %p338 = scmp.ne.s32.totalorder %s323, %s337
      %p339 = scmp.eq.s32.totalorder %s40, 0
      %p340 = por %p338, %p339
      %s342 = sadd.s32 %s341, 1
      %p345 = scmp.eq.s32.totalorder %s34, 2
      %p346 = scmp.ne.s32.totalorder %s341, %s343
      %p347 = scmp.eq.s32.totalorder %s34, 0
      %p348 = por %p346, %p347
      %p349 = scmp.ne.s32.totalorder %s341, %s343
      %p350 = scmp.eq.s32.totalorder %s39, 2
      %p351 = por %p349, %p350
      %p352 = scmp.ne.s32.totalorder %s343, %s344
      %p353 = scmp.eq.s32.totalorder %s39, 0
      %p354 = por %p352, %p353
      %p355 = scmp.ne.s32.totalorder %s343, %s344
      %p356 = scmp.eq.s32.totalorder %s40, 2
      %p357 = por %p355, %p356
      %p359 = scmp.ne.s32.totalorder %s344, %s358
      %p360 = scmp.eq.s32.totalorder %s40, 0
      %p361 = por %p359, %p360
      %s363 = sadd.s32 %s362, 1
      %p366 = scmp.eq.s32.totalorder %s34, 2
      %p367 = scmp.ne.s32.totalorder %s362, %s364
      %p368 = scmp.eq.s32.totalorder %s34, 0
      %p369 = por %p367, %p368
      %p370 = scmp.ne.s32.totalorder %s362, %s364
      %p371 = scmp.eq.s32.totalorder %s39, 2
      %p372 = por %p370, %p371
      %p373 = scmp.ne.s32.totalorder %s364, %s365
      %p374 = scmp.eq.s32.totalorder %s39, 0
      %p375 = por %p373, %p374
      %p376 = scmp.ne.s32.totalorder %s364, %s365
      %p377 = scmp.eq.s32.totalorder %s40, 2
      %p378 = por %p376, %p377
      %p380 = scmp.ne.s32.totalorder %s365, %s379
      %p381 = scmp.eq.s32.totalorder %s40, 0
      %p382 = por %p380, %p381
      %s384 = sadd.s32 %s383, 1
      %p387 = scmp.eq.s32.totalorder %s34, 2
      %p388 = scmp.ne.s32.totalorder %s383, %s385
      %p389 = scmp.eq.s32.totalorder %s34, 0
      %p390 = por %p388, %p389
      %p391 = scmp.ne.s32.totalorder %s383, %s385
      %p392 = scmp.eq.s32.totalorder %s39, 2
      %p393 = por %p391, %p392
      %p394 = scmp.ne.s32.totalorder %s385, %s386
      %p395 = scmp.eq.s32.totalorder %s39, 0
      %p396 = por %p394, %p395
      %p397 = scmp.ne.s32.totalorder %s385, %s386
      %p398 = scmp.eq.s32.totalorder %s40, 2
      %p399 = por %p397, %p398
      %p401 = scmp.ne.s32.totalorder %s386, %s400
      %p402 = scmp.eq.s32.totalorder %s40, 0
      %p403 = por %p401, %p402
      %s405 = sadd.s32 %s404, 1
      %p408 = scmp.eq.s32.totalorder %s34, 2
      %p409 = scmp.ne.s32.totalorder %s404, %s406
      %p410 = scmp.eq.s32.totalorder %s34, 0
      %p411 = por %p409, %p410
      %p412 = scmp.ne.s32.totalorder %s404, %s406
      %p413 = scmp.eq.s32.totalorder %s39, 2
      %p414 = por %p412, %p413
      %p415 = scmp.ne.s32.totalorder %s406, %s407
      %p416 = scmp.eq.s32.totalorder %s39, 0
      %p417 = por %p415, %p416
      %p418 = scmp.ne.s32.totalorder %s406, %s407
      %p419 = scmp.eq.s32.totalorder %s40, 2
      %p420 = por %p418, %p419
      %p422 = scmp.ne.s32.totalorder %s407, %s421
      %p423 = scmp.eq.s32.totalorder %s40, 0
      %p424 = por %p422, %p423
      %s426 = sadd.s32 %s425, 1
      %p429 = scmp.eq.s32.totalorder %s34, 2
      %p430 = scmp.ne.s32.totalorder %s425, %s427
      %p431 = scmp.eq.s32.totalorder %s34, 0
      %p432 = por %p430, %p431
      %p433 = scmp.ne.s32.totalorder %s425, %s427
      %p434 = scmp.eq.s32.totalorder %s39, 2
      %p435 = por %p433, %p434
      %p436 = scmp.ne.s32.totalorder %s427, %s428
      %p437 = scmp.eq.s32.totalorder %s39, 0
      %p438 = por %p436, %p437
      %p439 = scmp.ne.s32.totalorder %s427, %s428
      %p440 = scmp.eq.s32.totalorder %s40, 2
      %p441 = por %p439, %p440
      %p443 = scmp.ne.s32.totalorder %s428, %s442
      %p444 = scmp.eq.s32.totalorder %s40, 0
      %p445 = por %p443, %p444
      %s447 = sadd.s32 %s446, 1
      %p450 = scmp.eq.s32.totalorder %s34, 2
      %p451 = scmp.ne.s32.totalorder %s446, %s448
      %p452 = scmp.eq.s32.totalorder %s34, 0
      %p453 = por %p451, %p452
      %p454 = scmp.ne.s32.totalorder %s446, %s448
      %p455 = scmp.eq.s32.totalorder %s39, 2
      %p456 = por %p454, %p455
      %p457 = scmp.ne.s32.totalorder %s448, %s449
      %p458 = scmp.eq.s32.totalorder %s39, 0
      %p459 = por %p457, %p458
      %p460 = scmp.ne.s32.totalorder %s448, %s449
      %p461 = scmp.eq.s32.totalorder %s40, 2
      %p462 = por %p460, %p461
      %p464 = scmp.ne.s32.totalorder %s449, %s463
      %p465 = scmp.eq.s32.totalorder %s40, 0
      %p466 = por %p464, %p465
      %s468 = sadd.s32 %s467, 1
      %p471 = scmp.eq.s32.totalorder %s34, 2
      %p472 = scmp.ne.s32.totalorder %s467, %s469
      %p473 = scmp.eq.s32.totalorder %s34, 0
      %p474 = por %p472, %p473
      %p475 = scmp.ne.s32.totalorder %s467, %s469
      %p476 = scmp.eq.s32.totalorder %s39, 2
      %p477 = por %p475, %p476
      %p478 = scmp.ne.s32.totalorder %s469, %s470
      %p479 = scmp.eq.s32.totalorder %s39, 0
      %p480 = por %p478, %p479
      %p481 = scmp.ne.s32.totalorder %s469, %s470
      %p482 = scmp.eq.s32.totalorder %s40, 2
      %p483 = por %p481, %p482
      %p485 = scmp.ne.s32.totalorder %s470, %s484
      %p486 = scmp.eq.s32.totalorder %s40, 0
      %p487 = por %p485, %p486
      %s488 = ssub.s32 %s34, %s41
      %p489 = scmp.eq.s32.totalorder %s488, 0
      %s491 = sadd.s32 %s490, 1
      %s492 = scalar_select %p489, %s490, %s491
      %p495 = pneg %p489
      %p496 = scmp.eq.s32.totalorder %s34, 2
      %p497 = por %p495, %p496
      %p498 = scmp.ne.s32.totalorder %s490, %s493
      %p499 = scmp.eq.s32.totalorder %s34, 0
      %p500 = por %p498, %p499
      %p501 = scmp.ne.s32.totalorder %s490, %s493
      %p502 = scmp.eq.s32.totalorder %s39, 2
      %p503 = por %p501, %p502
      %p504 = scmp.ne.s32.totalorder %s493, %s494
      %p505 = scmp.eq.s32.totalorder %s39, 0
      %p506 = por %p504, %p505
      %p507 = scmp.ne.s32.totalorder %s493, %s494
      %p508 = scmp.eq.s32.totalorder %s40, 2
      %p509 = por %p507, %p508
      %p511 = scmp.ne.s32.totalorder %s494, %s510
      %p512 = scmp.eq.s32.totalorder %s40, 0
      %p513 = por %p511, %p512
      %p514 = scmp.le.s32.totalorder 1, %s34
      %p515 = scmp.lt.s32.totalorder %s34, 4
      %p516 = pnand %p514, %p515
      %p517 = pneg %p516
      // Predicated region
      $region9: #{tpu_custom_call.1} parent=5 // pred_check
        _
      $region10: #{tpu_custom_call.1} parent=5 // pred_check_branch
        %519 = sbr.rel (%p516) target = $region12
      $region11: #{tpu_custom_call.1} parent=5 // pred_region
        %s520 = ssub.s32 %s34, 1
        // Predicated region
        $region13: #{tpu_custom_call.1} parent=11 // pred_check
          %p521 = pneg %p81
        $region14: #{tpu_custom_call.1} parent=11 // pred_check_branch
          %523 = sbr.rel (%p521) target = $region16
        $region15: #{tpu_custom_call.1} parent=11 // pred_region
          %s525 = ssub.s32 7168, 7168
          %526 = vsyncadd [#allocation3], %s525
          %s527 = sshll.u32 [#allocation2], 4
          %s528 = int_to_ptr.vmem [resolvable:$true] %s527
          %533 = dma.hbm_to_vmem [thread:$0]  %s1, 7168, %s528, [#allocation3], 64, 64, 4
        $region16: #{tpu_custom_call.1} parent=11 // pred_fallthru
          _
        // Predicated region
        $region17: #{tpu_custom_call.1} parent=11 // pred_check
          %p534 = pneg %p102
        $region18: #{tpu_custom_call.1} parent=11 // pred_check_branch
          %536 = sbr.rel (%p534) target = $region20
        $region19: #{tpu_custom_call.1} parent=11 // pred_region
          _
        $region20: #{tpu_custom_call.1} parent=11 // pred_fallthru
          _
        // Predicated region
        $region21: #{tpu_custom_call.1} parent=11 // pred_check
          %p537 = pneg %p123
        $region22: #{tpu_custom_call.1} parent=11 // pred_check_branch
          %539 = sbr.rel (%p537) target = $region24
        $region23: #{tpu_custom_call.1} parent=11 // pred_region
          _
        $region24: #{tpu_custom_call.1} parent=11 // pred_fallthru
          _
        // Predicated region
        $region25: #{tpu_custom_call.1} parent=11 // pred_check
          %p540 = pneg %p144
        $region26: #{tpu_custom_call.1} parent=11 // pred_check_branch
          %542 = sbr.rel (%p540) target = $region28
        $region27: #{tpu_custom_call.1} parent=11 // pred_region
          _
        $region28: #{tpu_custom_call.1} parent=11 // pred_fallthru
          _
        // Predicated region
        $region29: #{tpu_custom_call.1} parent=11 // pred_check
          %p543 = pneg %p165
        $region30: #{tpu_custom_call.1} parent=11 // pred_check_branch
          %545 = sbr.rel (%p543) target = $region32
        $region31: #{tpu_custom_call.1} parent=11 // pred_region
          _
        $region32: #{tpu_custom_call.1} parent=11 // pred_fallthru
          _
        // Predicated region
        $region33: #{tpu_custom_call.1} parent=11 // pred_check
          %p546 = pneg %p186
        $region34: #{tpu_custom_call.1} parent=11 // pred_check_branch
          %548 = sbr.rel (%p546) target = $region36
        $region35: #{tpu_custom_call.1} parent=11 // pred_region
          %s550 = ssub.s32 128, 128
          %551 = vsyncadd [#allocation6], %s550
          %s552 = sshll.u32 [#allocation5], 4
          %s553 = int_to_ptr.vmem [resolvable:$true] %s552
          %558 = dma.hbm_to_vmem [thread:$0]  %s6, 128, %s553, [#allocation6], 64, 64, 4
        $region36: #{tpu_custom_call.1} parent=11 // pred_fallthru
          _
        // Predicated region
        $region37: #{tpu_custom_call.1} parent=11 // pred_check
          %p559 = pneg %p207
        $region38: #{tpu_custom_call.1} parent=11 // pred_check_branch
          %561 = sbr.rel (%p559) target = $region40
        $region39: #{tpu_custom_call.1} parent=11 // pred_region
          %s563 = ssub.s32 192, 192
          %564 = vsyncadd [#allocation6], %s563
          %s565 = sshll.u32 [#allocation7], 4
          %s566 = int_to_ptr.vmem [resolvable:$true] %s565
          %571 = dma.hbm_to_vmem [thread:$0]  %s7, 192, %s566, [#allocation6], 64, 64, 4
        $region40: #{tpu_custom_call.1} parent=11 // pred_fallthru
          _
        // Predicated region
        $region41: #{tpu_custom_call.1} parent=11 // pred_check
          %p572 = pneg %p228
        $region42: #{tpu_custom_call.1} parent=11 // pred_check_branch
          %574 = sbr.rel (%p572) target = $region44
        $region43: #{tpu_custom_call.1} parent=11 // pred_region
          %s576 = ssub.s32 320, 320
          %577 = vsyncadd [#allocation9], %s576
          %s578 = sshll.u32 [#allocation8], 4
          %s579 = int_to_ptr.vmem [resolvable:$true] %s578
          %584 = dma.hbm_to_vmem [thread:$0]  %s8, 320, %s579, [#allocation9], 64, 64, 4
        $region44: #{tpu_custom_call.1} parent=11 // pred_fallthru
          _
        // Predicated region
        $region45: #{tpu_custom_call.1} parent=11 // pred_check
          %p585 = pneg %p249
        $region46: #{tpu_custom_call.1} parent=11 // pred_check_branch
          %587 = sbr.rel (%p585) target = $region48
        $region47: #{tpu_custom_call.1} parent=11 // pred_region
          %s589 = ssub.s32 512, 512
          %590 = vsyncadd [#allocation9], %s589
          %s591 = sshll.u32 [#allocation10], 4
          %s592 = int_to_ptr.vmem [resolvable:$true] %s591
          %597 = dma.hbm_to_vmem [thread:$0]  %s9, 512, %s592, [#allocation9], 64, 64, 4
        $region48: #{tpu_custom_call.1} parent=11 // pred_fallthru
          _
        // Predicated region
        $region49: #{tpu_custom_call.1} parent=11 // pred_check
          %p598 = pneg %p270
        $region50: #{tpu_custom_call.1} parent=11 // pred_check_branch
          %600 = sbr.rel (%p598) target = $region52
        $region51: #{tpu_custom_call.1} parent=11 // pred_region
          %s602 = ssub.s32 7168, 7168
          %603 = vsyncadd [#allocation12], %s602
          %s604 = sshll.u32 [#allocation11], 4
          %s605 = int_to_ptr.vmem [resolvable:$true] %s604
          %610 = dma.hbm_to_vmem [thread:$0]  %s10, 7168, %s605, [#allocation12], 448, 448, 28
        $region52: #{tpu_custom_call.1} parent=11 // pred_fallthru
          _
        // Predicated region
        $region53: #{tpu_custom_call.1} parent=11 // pred_check
          %p611 = pneg %p291
        $region54: #{tpu_custom_call.1} parent=11 // pred_check_branch
          %613 = sbr.rel (%p611) target = $region56
        $region55: #{tpu_custom_call.1} parent=11 // pred_region
          _
        $region56: #{tpu_custom_call.1} parent=11 // pred_fallthru
          _
        // Predicated region
        $region57: #{tpu_custom_call.1} parent=11 // pred_check
          %p614 = pneg %p312
        $region58: #{tpu_custom_call.1} parent=11 // pred_check_branch
          %616 = sbr.rel (%p614) target = $region60
        $region59: #{tpu_custom_call.1} parent=11 // pred_region
          _
        $region60: #{tpu_custom_call.1} parent=11 // pred_fallthru
          _
        // Predicated region
        $region61: #{tpu_custom_call.1} parent=11 // pred_check
          %p617 = pneg %p333
        $region62: #{tpu_custom_call.1} parent=11 // pred_check_branch
          %619 = sbr.rel (%p617) target = $region64
        $region63: #{tpu_custom_call.1} parent=11 // pred_region
          _
        $region64: #{tpu_custom_call.1} parent=11 // pred_fallthru
          _
        // Predicated region
        $region65: #{tpu_custom_call.1} parent=11 // pred_check
          %p620 = pneg %p354
        $region66: #{tpu_custom_call.1} parent=11 // pred_check_branch
          %622 = sbr.rel (%p620) target = $region68
        $region67: #{tpu_custom_call.1} parent=11 // pred_region
          _
        $region68: #{tpu_custom_call.1} parent=11 // pred_fallthru
          _
        // Predicated region
        $region69: #{tpu_custom_call.1} parent=11 // pred_check
          %p623 = pneg %p375
        $region70: #{tpu_custom_call.1} parent=11 // pred_check_branch
          %625 = sbr.rel (%p623) target = $region72
        $region71: #{tpu_custom_call.1} parent=11 // pred_region
          _
        $region72: #{tpu_custom_call.1} parent=11 // pred_fallthru
          _
        // Predicated region
        $region73: #{tpu_custom_call.1} parent=11 // pred_check
          %p626 = pneg %p396
        $region74: #{tpu_custom_call.1} parent=11 // pred_check_branch
          %628 = sbr.rel (%p626) target = $region76
        $region75: #{tpu_custom_call.1} parent=11 // pred_region
          _
        $region76: #{tpu_custom_call.1} parent=11 // pred_fallthru
          _
        // Predicated region
        $region77: #{tpu_custom_call.1} parent=11 // pred_check
          %p629 = pneg %p417
        $region78: #{tpu_custom_call.1} parent=11 // pred_check_branch
          %631 = sbr.rel (%p629) target = $region80
        $region79: #{tpu_custom_call.1} parent=11 // pred_region
          _
        $region80: #{tpu_custom_call.1} parent=11 // pred_fallthru
          _
        // Predicated region
        $region81: #{tpu_custom_call.1} parent=11 // pred_check
          %p632 = pneg %p438
        $region82: #{tpu_custom_call.1} parent=11 // pred_check_branch
          %634 = sbr.rel (%p632) target = $region84
        $region83: #{tpu_custom_call.1} parent=11 // pred_region
          _
        $region84: #{tpu_custom_call.1} parent=11 // pred_fallthru
          _
        // Predicated region
        $region85: #{tpu_custom_call.1} parent=11 // pred_check
          %p635 = pneg %p459
        $region86: #{tpu_custom_call.1} parent=11 // pred_check_branch
          %637 = sbr.rel (%p635) target = $region88
        $region87: #{tpu_custom_call.1} parent=11 // pred_region
          _
        $region88: #{tpu_custom_call.1} parent=11 // pred_fallthru
          _
        // Predicated region
        $region89: #{tpu_custom_call.1} parent=11 // pred_check
          %p638 = pneg %p480
        $region90: #{tpu_custom_call.1} parent=11 // pred_check_branch
          %640 = sbr.rel (%p638) target = $region92
        $region91: #{tpu_custom_call.1} parent=11 // pred_region
          _
        $region92: #{tpu_custom_call.1} parent=11 // pred_fallthru
          _
      $region12: #{tpu_custom_call.1} parent=5 // pred_fallthru
        _
      %p641 = scmp.lt.s32.totalorder %s34, 3
      // Predicated region
      $region93: #{tpu_custom_call.1} parent=5 // pred_check
        %p642 = pneg %p641
      $region94: #{tpu_custom_call.1} parent=5 // pred_check_branch
        %644 = sbr.rel (%p642) target = $region96
      $region95: #{tpu_custom_call.1} parent=5 // pred_region
        // Predicated region
        $region97: #{tpu_custom_call.1} parent=95 // pred_check
          %p645 = pneg %p54
        $region98: #{tpu_custom_call.1} parent=95 // pred_check_branch
          %647 = sbr.rel (%p645) target = $region100
        $region99: #{tpu_custom_call.1} parent=95 // pred_region
          %s648 = smul.u32 2, %s34
          %p649 = scmp.lt.s32.totalorder %s648, 5
          %s650 = scalar_select %p649, %s648, 5
          %s651 = smul.addr %s650, 7
          %s652 = smul.addr %s651, 4
          %s653 = scalar_lea.vmem %s0, %s652
          %s654 = smul.u32 2, %s34
        $region100: #{tpu_custom_call.1} parent=95 // pred_fallthru
          _
      $region96: #{tpu_custom_call.1} parent=5 // pred_fallthru
        _
      %p655 = scmp.le.s32.totalorder 1, %s34
      %p656 = scmp.lt.s32.totalorder %s34, 4
      %p657 = pnand %p655, %p656
      %p658 = pneg %p657
      // Predicated region
      $region101: #{tpu_custom_call.1} parent=5 // pred_check
        _
      $region102: #{tpu_custom_call.1} parent=5 // pred_check_branch
        %660 = sbr.rel (%p657) target = $region104
      $region103: #{tpu_custom_call.1} parent=5 // pred_region
        %s661 = ssub.s32 %s34, 1
        // Predicated region
        $region105: #{tpu_custom_call.1} parent=103 // pred_check
          %p662 = pneg %p81
        $region106: #{tpu_custom_call.1} parent=103 // pred_check_branch
          %664 = sbr.rel (%p662) target = $region108
        $region107: #{tpu_custom_call.1} parent=103 // pred_region
          %665 = dma.done [#allocation3], 7168
        $region108: #{tpu_custom_call.1} parent=103 // pred_fallthru
          _
        // Predicated region
        $region109: #{tpu_custom_call.1} parent=103 // pred_check
          %p666 = pneg %p186
        $region110: #{tpu_custom_call.1} parent=103 // pred_check_branch
          %668 = sbr.rel (%p666) target = $region112
        $region111: #{tpu_custom_call.1} parent=103 // pred_region
          %669 = dma.done [#allocation6], 128
        $region112: #{tpu_custom_call.1} parent=103 // pred_fallthru
          _
        // Predicated region
        $region113: #{tpu_custom_call.1} parent=103 // pred_check
          %p670 = pneg %p207
        $region114: #{tpu_custom_call.1} parent=103 // pred_check_branch
          %672 = sbr.rel (%p670) target = $region116
        $region115: #{tpu_custom_call.1} parent=103 // pred_region
          %673 = dma.done [#allocation6], 192
        $region116: #{tpu_custom_call.1} parent=103 // pred_fallthru
          _
        // Predicated region
        $region117: #{tpu_custom_call.1} parent=103 // pred_check
          %p674 = pneg %p228
        $region118: #{tpu_custom_call.1} parent=103 // pred_check_branch
          %676 = sbr.rel (%p674) target = $region120
        $region119: #{tpu_custom_call.1} parent=103 // pred_region
          %677 = dma.done [#allocation9], 320
        $region120: #{tpu_custom_call.1} parent=103 // pred_fallthru
          _
        // Predicated region
        $region121: #{tpu_custom_call.1} parent=103 // pred_check
          %p678 = pneg %p249
        $region122: #{tpu_custom_call.1} parent=103 // pred_check_branch
          %680 = sbr.rel (%p678) target = $region124
        $region123: #{tpu_custom_call.1} parent=103 // pred_region
          %681 = dma.done [#allocation9], 512
        $region124: #{tpu_custom_call.1} parent=103 // pred_fallthru
          _
        // Predicated region
        $region125: #{tpu_custom_call.1} parent=103 // pred_check
          %p682 = pneg %p270
        $region126: #{tpu_custom_call.1} parent=103 // pred_check_branch
          %684 = sbr.rel (%p682) target = $region128
        $region127: #{tpu_custom_call.1} parent=103 // pred_region
          %685 = dma.done [#allocation12], 7168
        $region128: #{tpu_custom_call.1} parent=103 // pred_fallthru
          _
        %s686 = smul.u32 2, %s39
        %p687 = scmp.lt.s32.totalorder %s686, 5
        %s688 = scalar_select %p687, %s686, 5
        %s689 = smul.addr %s688, 7
        %s690 = smul.addr %s689, 4
        %s691 = scalar_lea.vmem %s0, %s690
        %p692 = pneg %p60
        %p693 = pneg %p57
        %p694 = pneg %p81
        %p695 = pneg %p78
        %p696 = pneg %p102
        %p697 = pneg %p99
        %p698 = pneg %p123
        %p699 = pneg %p120
        %p700 = pneg %p144
        %p701 = pneg %p141
        %p702 = pneg %p165
        %p703 = pneg %p162
        %p704 = pneg %p186
        %p705 = pneg %p183
        %p706 = pneg %p207
        %p707 = pneg %p204
        %p708 = pneg %p228
        %p709 = pneg %p225
        %p710 = pneg %p249
        %p711 = pneg %p246
        %p712 = pneg %p270
        %p713 = pneg %p267
        %p714 = pneg %p291
        %p715 = pneg %p288
        %p716 = pneg %p312
        %p717 = pneg %p309
        %p718 = pneg %p333
        %p719 = pneg %p330
        %p720 = pneg %p354
        %p721 = pneg %p351
        %p722 = pneg %p375
        %p723 = pneg %p372
        %p724 = pneg %p396
        %p725 = pneg %p393
        %p726 = pneg %p417
        %p727 = pneg %p414
        %p728 = pneg %p438
        %p729 = pneg %p435
        %p730 = pneg %p459
        %p731 = pneg %p456
        %p732 = pneg %p480
        %p733 = pneg %p477
        %p734 = pneg %p506
        %p735 = pneg %p503
        %s736 = sand.u32 %s493, 1
        %s737 = scalar_lea.sflag [#allocation4], %s736
        %s738 = sand.u32 %s493, 1
        %s739 = smul.addr %s738, 112
        %s740 = scalar_lea.vmem [#allocation13], %s739
        %s741 = smul.u32 2, %s39
        %p742 = scmp.lt.s32.totalorder %s741, 5
        %s743 = scalar_select %p742, %s741, 5
        %s744 = smul.addr %s743, 7
        %s745 = smul.addr %s744, 4
        %s746 = scalar_lea.vmem %s0, %s745
        %s747 = smul.u32 2, %s39
        %s748 = smul.u32 2, %s39
        %v750 = vld [vmem:[%s746] sm:$0xff]
        %v751 = vld [vmem:[%s746 + $0x8] sm:$0xff]
        %v752 = vld [vmem:[%s746 + $0x10] sm:$0xff]
        %v753 = vld [vmem:[%s746 + $0x18] sm:$0xf]
        %v754 = vld [vmem:[%s746 + $0x1c] sm:$0xff]
        %v755 = vld [vmem:[%s746 + $0x24] sm:$0xff]
        %v756 = vld [vmem:[%s746 + $0x2c] sm:$0xff]
        %v757 = vld [vmem:[%s746 + $0x34] sm:$0xf]
        %v758 = vld [vmem:[#allocation2] sm:$0xf]
        %v759 = vld [vmem:[#allocation2 + $0x4] sm:$0xf]
        %v760 = vld [vmem:[#allocation2 + $0x8] sm:$0xf]
        %v761 = vld [vmem:[#allocation2 + $0xc] sm:$0xf]
        %v762 = vld [vmem:[#allocation2 + $0x10] sm:$0xf]
        %v763 = vld [vmem:[#allocation2 + $0x14] sm:$0xf]
        %v764 = vld [vmem:[#allocation2 + $0x18] sm:$0xf]
        %v765 = vld [vmem:[#allocation2 + $0x1c] sm:$0xf]
        %v766 = vld [vmem:[#allocation2 + $0x20] sm:$0xf]
        %v767 = vld [vmem:[#allocation2 + $0x24] sm:$0xf]
        %v768 = vld [vmem:[#allocation2 + $0x28] sm:$0xf]
        %v769 = vld [vmem:[#allocation2 + $0x2c] sm:$0xf]
        %v770 = vld [vmem:[#allocation2 + $0x30] sm:$0xf]
        %v771 = vld [vmem:[#allocation2 + $0x34] sm:$0xf]
        %v772 = vld [vmem:[#allocation2 + $0x38] sm:$0xf]
        %v773 = vld [vmem:[#allocation2 + $0x3c] sm:$0xf]
        %v774 = vld [vmem:[#allocation2 + $0x40] sm:$0xf]
        %v775 = vld [vmem:[#allocation2 + $0x44] sm:$0xf]
        %v776 = vld [vmem:[#allocation2 + $0x48] sm:$0xf]
        %v777 = vld [vmem:[#allocation2 + $0x4c] sm:$0xf]
        %v778 = vld [vmem:[#allocation2 + $0x50] sm:$0xf]
        %v779 = vld [vmem:[#allocation2 + $0x54] sm:$0xf]
        %v780 = vld [vmem:[#allocation2 + $0x58] sm:$0xf]
        %v781 = vld [vmem:[#allocation2 + $0x5c] sm:$0xf]
        %v782 = vld [vmem:[#allocation2 + $0x60] sm:$0xf]
        %v783 = vld [vmem:[#allocation2 + $0x64] sm:$0xf]
        %v784 = vld [vmem:[#allocation2 + $0x68] sm:$0xf]
        %v785 = vld [vmem:[#allocation2 + $0x6c] sm:$0xf]
        %v786 = vld [vmem:[#allocation2 + $0x70] sm:$0xf]
        %v787 = vld [vmem:[#allocation2 + $0x74] sm:$0xf]
        %v788 = vld [vmem:[#allocation2 + $0x78] sm:$0xf]
        %v789 = vld [vmem:[#allocation2 + $0x7c] sm:$0xf]
        %v790 = vld [vmem:[#allocation2 + $0x80] sm:$0xf]
        %v791 = vld [vmem:[#allocation2 + $0x84] sm:$0xf]
        %v792 = vld [vmem:[#allocation2 + $0x88] sm:$0xf]
        %v793 = vld [vmem:[#allocation2 + $0x8c] sm:$0xf]
        %v794 = vld [vmem:[#allocation2 + $0x90] sm:$0xf]
        %v795 = vld [vmem:[#allocation2 + $0x94] sm:$0xf]
        %v796 = vld [vmem:[#allocation2 + $0x98] sm:$0xf]
        %v797 = vld [vmem:[#allocation2 + $0x9c] sm:$0xf]
        %v798 = vld [vmem:[#allocation2 + $0xa0] sm:$0xf]
        %v799 = vld [vmem:[#allocation2 + $0xa4] sm:$0xf]
        %v800 = vld [vmem:[#allocation2 + $0xa8] sm:$0xf]
        %v801 = vld [vmem:[#allocation2 + $0xac] sm:$0xf]
        %v802 = vld [vmem:[#allocation2 + $0xb0] sm:$0xf]
        %v803 = vld [vmem:[#allocation2 + $0xb4] sm:$0xf]
        %v804 = vld [vmem:[#allocation2 + $0xb8] sm:$0xf]
        %v805 = vld [vmem:[#allocation2 + $0xbc] sm:$0xf]
        %v806 = vld [vmem:[#allocation2 + $0xc0] sm:$0xf]
        %v807 = vld [vmem:[#allocation2 + $0xc4] sm:$0xf]
        %v808 = vld [vmem:[#allocation2 + $0xc8] sm:$0xf]
        %v809 = vld [vmem:[#allocation2 + $0xcc] sm:$0xf]
        %v810 = vld [vmem:[#allocation2 + $0xd0] sm:$0xf]
        %v811 = vld [vmem:[#allocation2 + $0xd4] sm:$0xf]
        %v812 = vld [vmem:[#allocation2 + $0xd8] sm:$0xf]
        %v813 = vld [vmem:[#allocation2 + $0xdc] sm:$0xf]
        %v814 = vld [vmem:[#allocation2 + $0xe0] sm:$0xf]
        %v815 = vld [vmem:[#allocation2 + $0xe4] sm:$0xf]
        %v816 = vld [vmem:[#allocation2 + $0xe8] sm:$0xf]
        %v817 = vld [vmem:[#allocation2 + $0xec] sm:$0xf]
        %v818 = vld [vmem:[#allocation2 + $0xf0] sm:$0xf]
        %v819 = vld [vmem:[#allocation2 + $0xf4] sm:$0xf]
        %v820 = vld [vmem:[#allocation2 + $0xf8] sm:$0xf]
        %v821 = vld [vmem:[#allocation2 + $0xfc] sm:$0xf]
        %v822 = vld [vmem:[#allocation2 + $0x100] sm:$0xf]
        %v823 = vld [vmem:[#allocation2 + $0x104] sm:$0xf]
        %v824 = vld [vmem:[#allocation2 + $0x108] sm:$0xf]
        %v825 = vld [vmem:[#allocation2 + $0x10c] sm:$0xf]
        %v826 = vld [vmem:[#allocation2 + $0x110] sm:$0xf]
        %v827 = vld [vmem:[#allocation2 + $0x114] sm:$0xf]
        %v828 = vld [vmem:[#allocation2 + $0x118] sm:$0xf]
        %v829 = vld [vmem:[#allocation2 + $0x11c] sm:$0xf]
        %v830 = vld [vmem:[#allocation2 + $0x120] sm:$0xf]
        %v831 = vld [vmem:[#allocation2 + $0x124] sm:$0xf]
        %v832 = vld [vmem:[#allocation2 + $0x128] sm:$0xf]
        %v833 = vld [vmem:[#allocation2 + $0x12c] sm:$0xf]
        %v834 = vld [vmem:[#allocation2 + $0x130] sm:$0xf]
        %v835 = vld [vmem:[#allocation2 + $0x134] sm:$0xf]
        %v836 = vld [vmem:[#allocation2 + $0x138] sm:$0xf]
        %v837 = vld [vmem:[#allocation2 + $0x13c] sm:$0xf]
        %v838 = vld [vmem:[#allocation2 + $0x140] sm:$0xf]
        %v839 = vld [vmem:[#allocation2 + $0x144] sm:$0xf]
        %v840 = vld [vmem:[#allocation2 + $0x148] sm:$0xf]
        %v841 = vld [vmem:[#allocation2 + $0x14c] sm:$0xf]
        %v842 = vld [vmem:[#allocation2 + $0x150] sm:$0xf]
        %v843 = vld [vmem:[#allocation2 + $0x154] sm:$0xf]
        %v844 = vld [vmem:[#allocation2 + $0x158] sm:$0xf]
        %v845 = vld [vmem:[#allocation2 + $0x15c] sm:$0xf]
        %v846 = vld [vmem:[#allocation2 + $0x160] sm:$0xf]
        %v847 = vld [vmem:[#allocation2 + $0x164] sm:$0xf]
        %v848 = vld [vmem:[#allocation2 + $0x168] sm:$0xf]
        %v849 = vld [vmem:[#allocation2 + $0x16c] sm:$0xf]
        %v850 = vld [vmem:[#allocation2 + $0x170] sm:$0xf]
        %v851 = vld [vmem:[#allocation2 + $0x174] sm:$0xf]
        %v852 = vld [vmem:[#allocation2 + $0x178] sm:$0xf]
        %v853 = vld [vmem:[#allocation2 + $0x17c] sm:$0xf]
        %v854 = vld [vmem:[#allocation2 + $0x180] sm:$0xf]
        %v855 = vld [vmem:[#allocation2 + $0x184] sm:$0xf]
        %v856 = vld [vmem:[#allocation2 + $0x188] sm:$0xf]
        %v857 = vld [vmem:[#allocation2 + $0x18c] sm:$0xf]
        %v858 = vld [vmem:[#allocation2 + $0x190] sm:$0xf]
        %v859 = vld [vmem:[#allocation2 + $0x194] sm:$0xf]
        %v860 = vld [vmem:[#allocation2 + $0x198] sm:$0xf]
        %v861 = vld [vmem:[#allocation2 + $0x19c] sm:$0xf]
        %v862 = vld [vmem:[#allocation2 + $0x1a0] sm:$0xf]
        %v863 = vld [vmem:[#allocation2 + $0x1a4] sm:$0xf]
        %v864 = vld [vmem:[#allocation2 + $0x1a8] sm:$0xf]
        %v865 = vld [vmem:[#allocation2 + $0x1ac] sm:$0xf]
        %v866 = vld [vmem:[#allocation2 + $0x1b0] sm:$0xf]
        %v867 = vld [vmem:[#allocation2 + $0x1b4] sm:$0xf]
        %v868 = vld [vmem:[#allocation2 + $0x1b8] sm:$0xf]
        %v869 = vld [vmem:[#allocation2 + $0x1bc] sm:$0xf]
        %v870 = vld [vmem:[%s11] sm:$0x1]
        %v872 = vlaneseq
        %v873 = vshrl.u32 %v872, 7
        %v874 = vsub.s32 0, %v873
        %v875 = vrot.slane %v870, %v874
        %v885 = vunpack.c.l.b16 %v750
        %v886 = vunpack.c.h.b16 %v750
        %v887 = vunpack.c.l.b16 %v751
        %v888 = vunpack.c.h.b16 %v751
        %v889 = vunpack.c.l.b16 %v752
        %v890 = vunpack.c.h.b16 %v752
        %v891 = vunpack.c.l.b16 %v753
        %v892 = vunpack.c.l.b16 %v754
        %v893 = vunpack.c.h.b16 %v754
        %v894 = vunpack.c.l.b16 %v755
        %v895 = vunpack.c.h.b16 %v755
        %v896 = vunpack.c.l.b16 %v756
        %v897 = vunpack.c.h.b16 %v756
        %v898 = vunpack.c.l.b16 %v757
        %v899 = vpack.c.b16 %v892, %v885
        %v900 = vpack.c.b16 %v893, %v886
        %v901 = vpack.c.b16 %v894, %v887
        %v902 = vpack.c.b16 %v895, %v888
        %v903 = vpack.c.b16 %v896, %v889
        %v904 = vpack.c.b16 %v897, %v890
        %v905 = vpack.c.b16 %v898, %v891
        %v1025 = vunpack.c.l.b16 %v758
        %v1026 = vunpack.c.l.b16 %v759
        %v1027 = vunpack.c.l.b16 %v760
        %v1028 = vunpack.c.l.b16 %v761
        %v1029 = vunpack.c.l.b16 %v762
        %v1030 = vunpack.c.l.b16 %v763
        %v1031 = vunpack.c.l.b16 %v764
        %v1032 = vunpack.c.l.b16 %v765
        %v1033 = vunpack.c.l.b16 %v766
        %v1034 = vunpack.c.l.b16 %v767
        %v1035 = vunpack.c.l.b16 %v768
        %v1036 = vunpack.c.l.b16 %v769
        %v1037 = vunpack.c.l.b16 %v770
        %v1038 = vunpack.c.l.b16 %v771
        %v1039 = vunpack.c.l.b16 %v772
        %v1040 = vunpack.c.l.b16 %v773
        %v1041 = vunpack.c.l.b16 %v774
        %v1042 = vunpack.c.l.b16 %v775
        %v1043 = vunpack.c.l.b16 %v776
        %v1044 = vunpack.c.l.b16 %v777
        %v1045 = vunpack.c.l.b16 %v778
        %v1046 = vunpack.c.l.b16 %v779
        %v1047 = vunpack.c.l.b16 %v780
        %v1048 = vunpack.c.l.b16 %v781
        %v1049 = vunpack.c.l.b16 %v782
        %v1050 = vunpack.c.l.b16 %v783
        %v1051 = vunpack.c.l.b16 %v784
        %v1052 = vunpack.c.l.b16 %v785
        %v1053 = vunpack.c.l.b16 %v786
        %v1054 = vunpack.c.l.b16 %v787
        %v1055 = vunpack.c.l.b16 %v788
        %v1056 = vunpack.c.l.b16 %v789
        %v1057 = vunpack.c.l.b16 %v790
        %v1058 = vunpack.c.l.b16 %v791
        %v1059 = vunpack.c.l.b16 %v792
        %v1060 = vunpack.c.l.b16 %v793
        %v1061 = vunpack.c.l.b16 %v794
        %v1062 = vunpack.c.l.b16 %v795
        %v1063 = vunpack.c.l.b16 %v796
        %v1064 = vunpack.c.l.b16 %v797
        %v1065 = vunpack.c.l.b16 %v798
        %v1066 = vunpack.c.l.b16 %v799
        %v1067 = vunpack.c.l.b16 %v800
        %v1068 = vunpack.c.l.b16 %v801
        %v1069 = vunpack.c.l.b16 %v802
        %v1070 = vunpack.c.l.b16 %v803
        %v1071 = vunpack.c.l.b16 %v804
        %v1072 = vunpack.c.l.b16 %v805
        %v1073 = vunpack.c.l.b16 %v806
        %v1074 = vunpack.c.l.b16 %v807
        %v1075 = vunpack.c.l.b16 %v808
        %v1076 = vunpack.c.l.b16 %v809
        %v1077 = vunpack.c.l.b16 %v810
        %v1078 = vunpack.c.l.b16 %v811
        %v1079 = vunpack.c.l.b16 %v812
        %v1080 = vunpack.c.l.b16 %v813
        %v1081 = vunpack.c.l.b16 %v814
        %v1082 = vunpack.c.l.b16 %v815
        %v1083 = vunpack.c.l.b16 %v816
        %v1084 = vunpack.c.l.b16 %v817
        %v1085 = vunpack.c.l.b16 %v818
        %v1086 = vunpack.c.l.b16 %v819
        %v1087 = vunpack.c.l.b16 %v820
        %v1088 = vunpack.c.l.b16 %v821
        %v1089 = vunpack.c.l.b16 %v822
        %v1090 = vunpack.c.l.b16 %v823
        %v1091 = vunpack.c.l.b16 %v824
        %v1092 = vunpack.c.l.b16 %v825
        %v1093 = vunpack.c.l.b16 %v826
        %v1094 = vunpack.c.l.b16 %v827
        %v1095 = vunpack.c.l.b16 %v828
        %v1096 = vunpack.c.l.b16 %v829
        %v1097 = vunpack.c.l.b16 %v830
        %v1098 = vunpack.c.l.b16 %v831
        %v1099 = vunpack.c.l.b16 %v832
        %v1100 = vunpack.c.l.b16 %v833
        %v1101 = vunpack.c.l.b16 %v834
        %v1102 = vunpack.c.l.b16 %v835
        %v1103 = vunpack.c.l.b16 %v836
        %v1104 = vunpack.c.l.b16 %v837
        %v1105 = vunpack.c.l.b16 %v838
        %v1106 = vunpack.c.l.b16 %v839
        %v1107 = vunpack.c.l.b16 %v840
        %v1108 = vunpack.c.l.b16 %v841
        %v1109 = vunpack.c.l.b16 %v842
        %v1110 = vunpack.c.l.b16 %v843
        %v1111 = vunpack.c.l.b16 %v844
        %v1112 = vunpack.c.l.b16 %v845
        %v1113 = vunpack.c.l.b16 %v846
        %v1114 = vunpack.c.l.b16 %v847
        %v1115 = vunpack.c.l.b16 %v848
        %v1116 = vunpack.c.l.b16 %v849
        %v1117 = vunpack.c.l.b16 %v850
        %v1118 = vunpack.c.l.b16 %v851
        %v1119 = vunpack.c.l.b16 %v852
        %v1120 = vunpack.c.l.b16 %v853
        %v1121 = vunpack.c.l.b16 %v854
        %v1122 = vunpack.c.l.b16 %v855
        %v1123 = vunpack.c.l.b16 %v856
        %v1124 = vunpack.c.l.b16 %v857
        %v1125 = vunpack.c.l.b16 %v858
        %v1126 = vunpack.c.l.b16 %v859
        %v1127 = vunpack.c.l.b16 %v860
        %v1128 = vunpack.c.l.b16 %v861
        %v1129 = vunpack.c.l.b16 %v862
        %v1130 = vunpack.c.l.b16 %v863
        %v1131 = vunpack.c.l.b16 %v864
        %v1132 = vunpack.c.l.b16 %v865
        %v1133 = vunpack.c.l.b16 %v866
        %v1134 = vunpack.c.l.b16 %v867
        %v1135 = vunpack.c.l.b16 %v868
        %v1136 = vunpack.c.l.b16 %v869
        %v1137 = vpack.c.b16 %v1026, %v1025
        %v1138 = vpack.c.b16 %v1028, %v1027
        %v1139 = vpack.c.b16 %v1030, %v1029
        %v1140 = vpack.c.b16 %v1032, %v1031
        %v1141 = vpack.c.b16 %v1034, %v1033
        %v1142 = vpack.c.b16 %v1036, %v1035
        %v1143 = vpack.c.b16 %v1038, %v1037
        %v1144 = vpack.c.b16 %v1040, %v1039
        %v1145 = vpack.c.b16 %v1042, %v1041
        %v1146 = vpack.c.b16 %v1044, %v1043
        %v1147 = vpack.c.b16 %v1046, %v1045
        %v1148 = vpack.c.b16 %v1048, %v1047
        %v1149 = vpack.c.b16 %v1050, %v1049
        %v1150 = vpack.c.b16 %v1052, %v1051
        %v1151 = vpack.c.b16 %v1054, %v1053
        %v1152 = vpack.c.b16 %v1056, %v1055
        %v1153 = vpack.c.b16 %v1058, %v1057
        %v1154 = vpack.c.b16 %v1060, %v1059
        %v1155 = vpack.c.b16 %v1062, %v1061
        %v1156 = vpack.c.b16 %v1064, %v1063
        %v1157 = vpack.c.b16 %v1066, %v1065
        %v1158 = vpack.c.b16 %v1068, %v1067
        %v1159 = vpack.c.b16 %v1070, %v1069
        %v1160 = vpack.c.b16 %v1072, %v1071
        %v1161 = vpack.c.b16 %v1074, %v1073
        %v1162 = vpack.c.b16 %v1076, %v1075
        %v1163 = vpack.c.b16 %v1078, %v1077
        %v1164 = vpack.c.b16 %v1080, %v1079
        %v1165 = vpack.c.b16 %v1082, %v1081
        %v1166 = vpack.c.b16 %v1084, %v1083
        %v1167 = vpack.c.b16 %v1086, %v1085
        %v1168 = vpack.c.b16 %v1088, %v1087
        %v1169 = vpack.c.b16 %v1090, %v1089
        %v1170 = vpack.c.b16 %v1092, %v1091
        %v1171 = vpack.c.b16 %v1094, %v1093
        %v1172 = vpack.c.b16 %v1096, %v1095
        %v1173 = vpack.c.b16 %v1098, %v1097
        %v1174 = vpack.c.b16 %v1100, %v1099
        %v1175 = vpack.c.b16 %v1102, %v1101
        %v1176 = vpack.c.b16 %v1104, %v1103
        %v1177 = vpack.c.b16 %v1106, %v1105
        %v1178 = vpack.c.b16 %v1108, %v1107
        %v1179 = vpack.c.b16 %v1110, %v1109
        %v1180 = vpack.c.b16 %v1112, %v1111
        %v1181 = vpack.c.b16 %v1114, %v1113
        %v1182 = vpack.c.b16 %v1116, %v1115
        %v1183 = vpack.c.b16 %v1118, %v1117
        %v1184 = vpack.c.b16 %v1120, %v1119
        %v1185 = vpack.c.b16 %v1122, %v1121
        %v1186 = vpack.c.b16 %v1124, %v1123
        %v1187 = vpack.c.b16 %v1126, %v1125
        %v1188 = vpack.c.b16 %v1128, %v1127
        %v1189 = vpack.c.b16 %v1130, %v1129
        %v1190 = vpack.c.b16 %v1132, %v1131
        %v1191 = vpack.c.b16 %v1134, %v1133
        %v1192 = vpack.c.b16 %v1136, %v1135
        %1249 = vmatprep.subr.bf16.mxu0 0
        %1250 = vmatpush1.bf16.msra.mxu0 %v1144
        %1251 = vmatprep.subr.bf16.mxu0 0
        %1252 = vmatpush1.bf16.msra.mxu0 %v1143
        %1253 = vmatprep.subr.bf16.mxu0 0
        %1254 = vmatpush1.bf16.msra.mxu0 %v1142
        %1255 = vmatprep.subr.bf16.mxu0 0
        %1256 = vmatpush1.bf16.msra.mxu0 %v1141
        %1257 = vmatprep.subr.bf16.mxu0 0
        %1258 = vmatpush1.bf16.msra.mxu0 %v1140
        %1259 = vmatprep.subr.bf16.mxu0 0
        %1260 = vmatpush1.bf16.msra.mxu0 %v1139
        %1261 = vmatprep.subr.bf16.mxu0 0
        %1262 = vmatpush1.bf16.msra.mxu0 %v1138
        %1263 = vmatprep.subr.bf16.mxu0 0
        %1264 = vmatpush1.bf16.msra.mxu0 %v1137
        %1265 = vmatprep.subr.bf16.mxu0 0
        %1266 = vmatpush2.bf16.msra.mxu0 %v1152
        %1267 = vmatprep.subr.bf16.mxu0 0
        %1268 = vmatpush2.bf16.msra.mxu0 %v1151
        %1269 = vmatprep.subr.bf16.mxu0 0
        %1270 = vmatpush2.bf16.msra.mxu0 %v1150
        %1271 = vmatprep.subr.bf16.mxu0 0
        %1272 = vmatpush2.bf16.msra.mxu0 %v1149
        %1273 = vmatprep.subr.bf16.mxu0 0
        %1274 = vmatpush2.bf16.msra.mxu0 %v1148
        %1275 = vmatprep.subr.bf16.mxu0 0
        %1276 = vmatpush2.bf16.msra.mxu0 %v1147
        %1277 = vmatprep.subr.bf16.mxu0 0
        %1278 = vmatpush2.bf16.msra.mxu0 %v1146
        %1279 = vmatprep.subr.bf16.mxu0 0
        %1280 = vmatpush2.bf16.msra.mxu0 %v1145
        %1281 = vmatprep.mubr.bf16.mxu0 %v900
        %1282 = vmatmul.mubr.bf16.gmra.mxu0 %v899
        %v1283 = vpop.f32.mrf.mxu0
        %v1284 = vadd.f32 %v875, %v1283
        %v1285 = vpop.f32.mrf.mxu0
        %v1286 = vpop.f32.mrf.mxu0
        %v1287 = vadd.f32 %v875, %v1286
        %v1288 = vpop.f32.mrf.mxu0
        %1289 = vdwg.mxu0
        %1290 = vmatprep.subr.bf16.mxu0 0
        %1291 = vmatpush1.bf16.msra.mxu0 %v1160
        %1292 = vmatprep.subr.bf16.mxu0 0
        %1293 = vmatpush1.bf16.msra.mxu0 %v1159
        %1294 = vmatprep.subr.bf16.mxu0 0
        %1295 = vmatpush1.bf16.msra.mxu0 %v1158
        %1296 = vmatprep.subr.bf16.mxu0 0
        %1297 = vmatpush1.bf16.msra.mxu0 %v1157
        %1298 = vmatprep.subr.bf16.mxu0 0
        %1299 = vmatpush1.bf16.msra.mxu0 %v1156
        %1300 = vmatprep.subr.bf16.mxu0 0
        %1301 = vmatpush1.bf16.msra.mxu0 %v1155
        %1302 = vmatprep.subr.bf16.mxu0 0
        %1303 = vmatpush1.bf16.msra.mxu0 %v1154
        %1304 = vmatprep.subr.bf16.mxu0 0
        %1305 = vmatpush1.bf16.msra.mxu0 %v1153
        %1306 = vmatprep.subr.bf16.mxu0 0
        %1307 = vmatpush2.bf16.msra.mxu0 %v1168
        %1308 = vmatprep.subr.bf16.mxu0 0
        %1309 = vmatpush2.bf16.msra.mxu0 %v1167
        %1310 = vmatprep.subr.bf16.mxu0 0
        %1311 = vmatpush2.bf16.msra.mxu0 %v1166
        %1312 = vmatprep.subr.bf16.mxu0 0
        %1313 = vmatpush2.bf16.msra.mxu0 %v1165
        %1314 = vmatprep.subr.bf16.mxu0 0
        %1315 = vmatpush2.bf16.msra.mxu0 %v1164
        %1316 = vmatprep.subr.bf16.mxu0 0
        %1317 = vmatpush2.bf16.msra.mxu0 %v1163
        %1318 = vmatprep.subr.bf16.mxu0 0
        %1319 = vmatpush2.bf16.msra.mxu0 %v1162
        %1320 = vmatprep.subr.bf16.mxu0 0
        %1321 = vmatpush2.bf16.msra.mxu0 %v1161
        %1322 = vmatprep.mubr.bf16.mxu0 %v902
        %1323 = vmatmul.mubr.bf16.gmra.mxu0 %v901
        %v1324 = vpop.f32.mrf.mxu0
        %v1325 = vadd.f32 %v1284, %v1324
        %v1326 = vpop.f32.mrf.mxu0
        %v1327 = vpop.f32.mrf.mxu0
        %v1328 = vadd.f32 %v1287, %v1327
        %v1329 = vpop.f32.mrf.mxu0
        %1330 = vdwg.mxu0
        %1331 = vmatprep.subr.bf16.mxu0 0
        %1332 = vmatpush1.bf16.msra.mxu0 %v1176
        %1333 = vmatprep.subr.bf16.mxu0 0
        %1334 = vmatpush1.bf16.msra.mxu0 %v1175
        %1335 = vmatprep.subr.bf16.mxu0 0
        %1336 = vmatpush1.bf16.msra.mxu0 %v1174
        %1337 = vmatprep.subr.bf16.mxu0 0
        %1338 = vmatpush1.bf16.msra.mxu0 %v1173
        %1339 = vmatprep.subr.bf16.mxu0 0
        %1340 = vmatpush1.bf16.msra.mxu0 %v1172
        %1341 = vmatprep.subr.bf16.mxu0 0
        %1342 = vmatpush1.bf16.msra.mxu0 %v1171
        %1343 = vmatprep.subr.bf16.mxu0 0
        %1344 = vmatpush1.bf16.msra.mxu0 %v1170
        %1345 = vmatprep.subr.bf16.mxu0 0
        %1346 = vmatpush1.bf16.msra.mxu0 %v1169
        %1347 = vmatprep.subr.bf16.mxu0 0
        %1348 = vmatpush2.bf16.msra.mxu0 %v1184
        %1349 = vmatprep.subr.bf16.mxu0 0
        %1350 = vmatpush2.bf16.msra.mxu0 %v1183
        %1351 = vmatprep.subr.bf16.mxu0 0
        %1352 = vmatpush2.bf16.msra.mxu0 %v1182
        %1353 = vmatprep.subr.bf16.mxu0 0
        %1354 = vmatpush2.bf16.msra.mxu0 %v1181
        %1355 = vmatprep.subr.bf16.mxu0 0
        %1356 = vmatpush2.bf16.msra.mxu0 %v1180
        %1357 = vmatprep.subr.bf16.mxu0 0
        %1358 = vmatpush2.bf16.msra.mxu0 %v1179
        %1359 = vmatprep.subr.bf16.mxu0 0
        %1360 = vmatpush2.bf16.msra.mxu0 %v1178
        %1361 = vmatprep.subr.bf16.mxu0 0
        %1362 = vmatpush2.bf16.msra.mxu0 %v1177
        %1363 = vmatprep.mubr.bf16.mxu0 %v904
        %1364 = vmatmul.mubr.bf16.gmra.mxu0 %v903
        %v1365 = vpop.f32.mrf.mxu0
        %v1366 = vadd.f32 %v1325, %v1365
        %v1367 = vpop.f32.mrf.mxu0
        %v1368 = vpop.f32.mrf.mxu0
        %v1369 = vadd.f32 %v1328, %v1368
        %v1370 = vpop.f32.mrf.mxu0
        %1371 = vdwg.mxu0
        %1372 = vmatprep.subr.bf16.mxu0 0
        %1373 = vmatpush1.bf16.msra.mxu0 %v1192
        %1374 = vmatprep.subr.bf16.mxu0 0
        %1375 = vmatpush1.bf16.msra.mxu0 %v1191
        %1376 = vmatprep.subr.bf16.mxu0 0
        %1377 = vmatpush1.bf16.msra.mxu0 %v1190
        %1378 = vmatprep.subr.bf16.mxu0 0
        %1379 = vmatpush1.bf16.msra.mxu0 %v1189
        %1380 = vmatprep.subr.bf16.mxu0 0
        %1381 = vmatpush1.bf16.msra.mxu0 %v1188
        %1382 = vmatprep.subr.bf16.mxu0 0
        %1383 = vmatpush1.bf16.msra.mxu0 %v1187
        %1384 = vmatprep.subr.bf16.mxu0 0
        %1385 = vmatpush1.bf16.msra.mxu0 %v1186
        %1386 = vmatprep.subr.bf16.mxu0 0
        %1387 = vmatpush1.bf16.msra.mxu0 %v1185
        %1388 = vmatprep.subr.bf16.mxu0 0
        %1389 = vmatpush2.bf16.msra.mxu0 0
        %1390 = vmatprep.subr.bf16.mxu0 0
        %1391 = vmatpush2.bf16.msra.mxu0 0
        %1392 = vmatprep.subr.bf16.mxu0 0
        %1393 = vmatpush2.bf16.msra.mxu0 0
        %1394 = vmatprep.subr.bf16.mxu0 0
        %1395 = vmatpush2.bf16.msra.mxu0 0
        %1396 = vmatprep.subr.bf16.mxu0 0
        %1397 = vmatpush2.bf16.msra.mxu0 0
        %1398 = vmatprep.subr.bf16.mxu0 0
        %1399 = vmatpush2.bf16.msra.mxu0 0
        %1400 = vmatprep.subr.bf16.mxu0 0
        %1401 = vmatpush2.bf16.msra.mxu0 0
        %1402 = vmatprep.subr.bf16.mxu0 0
        %1403 = vmatpush2.bf16.msra.mxu0 0
        %1404 = vmatprep.mubr.bf16.mxu0 0
        %1405 = vmatmul.mubr.bf16.gmra.mxu0 %v905
        %v1406 = vpop.f32.mrf.mxu0
        %v1407 = vadd.f32 %v1366, %v1406
        %v1408 = vpop.f32.mrf.mxu0
        %v1409 = vpop.f32.mrf.mxu0
        %v1410 = vadd.f32 %v1369, %v1409
        %v1411 = vpop.f32.mrf.mxu0
        %1412 = vdwg.mxu0
        %v1413 = vmax.f32 %v1407, 0.0
        %v1414 = vmax.f32 %v1410, 0.0
        %v1415 = vpack.c.bf16 %v1414, %v1413
        %v1416 = vld [vmem:[%s2] sm:$0xf]
        %v1417 = vld [vmem:[%s2 + $0x4] sm:$0xf]
        %v1418 = vld [vmem:[%s2 + $0x8] sm:$0xf]
        %v1419 = vld [vmem:[%s2 + $0xc] sm:$0xf]
        %v1420 = vld [vmem:[%s2 + $0x10] sm:$0xf]
        %v1421 = vld [vmem:[%s2 + $0x14] sm:$0xf]
        %v1422 = vld [vmem:[%s2 + $0x18] sm:$0xf]
        %v1423 = vld [vmem:[%s2 + $0x1c] sm:$0xf]
        %v1424 = vld [vmem:[%s2 + $0x20] sm:$0xf]
        %v1425 = vld [vmem:[%s2 + $0x24] sm:$0xf]
        %v1426 = vld [vmem:[%s2 + $0x28] sm:$0xf]
        %v1427 = vld [vmem:[%s2 + $0x2c] sm:$0xf]
        %v1428 = vld [vmem:[%s2 + $0x30] sm:$0xf]
        %v1429 = vld [vmem:[%s2 + $0x34] sm:$0xf]
        %v1430 = vld [vmem:[%s2 + $0x38] sm:$0xf]
        %v1431 = vld [vmem:[%s2 + $0x3c] sm:$0xf]
        %v1432 = vld [vmem:[%s12] sm:$0x1]
        %v1434 = vlaneseq
        %v1435 = vshrl.u32 %v1434, 7
        %v1436 = vsub.s32 0, %v1435
        %v1437 = vrot.slane %v1432, %v1436
        %v1455 = vunpack.c.l.b16 %v1416
        %v1456 = vunpack.c.l.b16 %v1417
        %v1457 = vunpack.c.l.b16 %v1418
        %v1458 = vunpack.c.l.b16 %v1419
        %v1459 = vunpack.c.l.b16 %v1420
        %v1460 = vunpack.c.l.b16 %v1421
        %v1461 = vunpack.c.l.b16 %v1422
        %v1462 = vunpack.c.l.b16 %v1423
        %v1463 = vunpack.c.l.b16 %v1424
        %v1464 = vunpack.c.l.b16 %v1425
        %v1465 = vunpack.c.l.b16 %v1426
        %v1466 = vunpack.c.l.b16 %v1427
        %v1467 = vunpack.c.l.b16 %v1428
        %v1468 = vunpack.c.l.b16 %v1429
        %v1469 = vunpack.c.l.b16 %v1430
        %v1470 = vunpack.c.l.b16 %v1431
        %v1471 = vpack.c.b16 %v1456, %v1455
        %v1472 = vpack.c.b16 %v1458, %v1457
        %v1473 = vpack.c.b16 %v1460, %v1459
        %v1474 = vpack.c.b16 %v1462, %v1461
        %v1475 = vpack.c.b16 %v1464, %v1463
        %v1476 = vpack.c.b16 %v1466, %v1465
        %v1477 = vpack.c.b16 %v1468, %v1467
        %v1478 = vpack.c.b16 %v1470, %v1469
        %1487 = vmatprep.subr.bf16.mxu0 0
        %1488 = vmatpush1.bf16.msra.mxu0 %v1478
        %1489 = vmatprep.subr.bf16.mxu0 0
        %1490 = vmatpush1.bf16.msra.mxu0 %v1477
        %1491 = vmatprep.subr.bf16.mxu0 0
        %1492 = vmatpush1.bf16.msra.mxu0 %v1476
        %1493 = vmatprep.subr.bf16.mxu0 0
        %1494 = vmatpush1.bf16.msra.mxu0 %v1475
        %1495 = vmatprep.subr.bf16.mxu0 0
        %1496 = vmatpush1.bf16.msra.mxu0 %v1474
        %1497 = vmatprep.subr.bf16.mxu0 0
        %1498 = vmatpush1.bf16.msra.mxu0 %v1473
        %1499 = vmatprep.subr.bf16.mxu0 0
        %1500 = vmatpush1.bf16.msra.mxu0 %v1472
        %1501 = vmatprep.subr.bf16.mxu0 0
        %1502 = vmatpush1.bf16.msra.mxu0 %v1471
        %1503 = vmatprep.subr.bf16.mxu0 0
        %1504 = vmatpush2.bf16.msra.mxu0 0
        %1505 = vmatprep.subr.bf16.mxu0 0
        %1506 = vmatpush2.bf16.msra.mxu0 0
        %1507 = vmatprep.subr.bf16.mxu0 0
        %1508 = vmatpush2.bf16.msra.mxu0 0
        %1509 = vmatprep.subr.bf16.mxu0 0
        %1510 = vmatpush2.bf16.msra.mxu0 0
        %1511 = vmatprep.subr.bf16.mxu0 0
        %1512 = vmatpush2.bf16.msra.mxu0 0
        %1513 = vmatprep.subr.bf16.mxu0 0
        %1514 = vmatpush2.bf16.msra.mxu0 0
        %1515 = vmatprep.subr.bf16.mxu0 0
        %1516 = vmatpush2.bf16.msra.mxu0 0
        %1517 = vmatprep.subr.bf16.mxu0 0
        %1518 = vmatpush2.bf16.msra.mxu0 0
        %1519 = vmatprep.mubr.bf16.mxu0 0
        %1520 = vmatmul.mubr.bf16.gmra.mxu0 %v1415
        %v1521 = vpop.f32.mrf.mxu0
        %v1522 = vadd.f32 %v1437, %v1521
        %v1523 = vpop.f32.mrf.mxu0
        %v1524 = vpop.f32.mrf.mxu0
        %v1525 = vadd.f32 %v1437, %v1524
        %v1526 = vpop.f32.mrf.mxu0
        %1527 = vdwg.mxu0
        %v1528 = vmax.f32 %v1522, 0.0
        %v1529 = vmax.f32 %v1525, 0.0
        %v1530 = vpack.c.bf16 %v1529, %v1528
        %v1531 = vld [vmem:[%s3] sm:$0xf]
        %v1532 = vld [vmem:[%s3 + $0x4] sm:$0xf]
        %v1533 = vld [vmem:[%s3 + $0x8] sm:$0xf]
        %v1534 = vld [vmem:[%s3 + $0xc] sm:$0xf]
        %v1535 = vld [vmem:[%s3 + $0x10] sm:$0xf]
        %v1536 = vld [vmem:[%s3 + $0x14] sm:$0xf]
        %v1537 = vld [vmem:[%s3 + $0x18] sm:$0xf]
        %v1538 = vld [vmem:[%s3 + $0x1c] sm:$0xf]
        %v1539 = vld [vmem:[%s13] sm:$0x1]
        %v1541 = vlaneseq
        %v1542 = vshrl.u32 %v1541, 7
        %v1543 = vsub.s32 0, %v1542
        %v1544 = vrot.slane %v1539, %v1543
        %v1554 = vunpack.c.l.b16 %v1531
        %v1555 = vunpack.c.l.b16 %v1532
        %v1556 = vunpack.c.l.b16 %v1533
        %v1557 = vunpack.c.l.b16 %v1534
        %v1558 = vunpack.c.l.b16 %v1535
        %v1559 = vunpack.c.l.b16 %v1536
        %v1560 = vunpack.c.l.b16 %v1537
        %v1561 = vunpack.c.l.b16 %v1538
        %v1562 = vpack.c.b16 %v1555, %v1554
        %v1563 = vpack.c.b16 %v1557, %v1556
        %v1564 = vpack.c.b16 %v1559, %v1558
        %v1565 = vpack.c.b16 %v1561, %v1560
        %vm1570 = vcmask 523264
        %v1572 = vsel %vm1570, %v1530, 0
        %1574 = vmatprep.subr.bf16.mxu0 0
        %1575 = vmatpush1.bf16.msra.mxu0 0
        %1576 = vmatprep.subr.bf16.mxu0 0
        %1577 = vmatpush1.bf16.msra.mxu0 0
        %1578 = vmatprep.subr.bf16.mxu0 0
        %1579 = vmatpush1.bf16.msra.mxu0 0
        %1580 = vmatprep.subr.bf16.mxu0 0
        %1581 = vmatpush1.bf16.msra.mxu0 0
        %1582 = vmatprep.subr.bf16.mxu0 0
        %1583 = vmatpush1.bf16.msra.mxu0 %v1565
        %1584 = vmatprep.subr.bf16.mxu0 0
        %1585 = vmatpush1.bf16.msra.mxu0 %v1564
        %1586 = vmatprep.subr.bf16.mxu0 0
        %1587 = vmatpush1.bf16.msra.mxu0 %v1563
        %1588 = vmatprep.subr.bf16.mxu0 0
        %1589 = vmatpush1.bf16.msra.mxu0 %v1562
        %1590 = vmatprep.subr.bf16.mxu0 0
        %1591 = vmatpush2.bf16.msra.mxu0 0
        %1592 = vmatprep.subr.bf16.mxu0 0
        %1593 = vmatpush2.bf16.msra.mxu0 0
        %1594 = vmatprep.subr.bf16.mxu0 0
        %1595 = vmatpush2.bf16.msra.mxu0 0
        %1596 = vmatprep.subr.bf16.mxu0 0
        %1597 = vmatpush2.bf16.msra.mxu0 0
        %1598 = vmatprep.subr.bf16.mxu0 0
        %1599 = vmatpush2.bf16.msra.mxu0 0
        %1600 = vmatprep.subr.bf16.mxu0 0
        %1601 = vmatpush2.bf16.msra.mxu0 0
        %1602 = vmatprep.subr.bf16.mxu0 0
        %1603 = vmatpush2.bf16.msra.mxu0 0
        %1604 = vmatprep.subr.bf16.mxu0 0
        %1605 = vmatpush2.bf16.msra.mxu0 0
        %1606 = vmatprep.mubr.bf16.mxu0 0
        %1607 = vmatmul.mubr.bf16.gmra.mxu0 %v1572
        %v1608 = vpop.f32.mrf.mxu0
        %v1609 = vadd.f32 %v1544, %v1608
        %v1610 = vpop.f32.mrf.mxu0
        %v1611 = vpop.f32.mrf.mxu0
        %v1612 = vadd.f32 %v1544, %v1611
        %v1613 = vpop.f32.mrf.mxu0
        %1614 = vdwg.mxu0
        %v1615 = vmax.f32 %v1609, 0.0
        %v1616 = vmax.f32 %v1612, 0.0
        %v1617 = vpack.c.bf16 %v1616, %v1615
        %v1618 = vld [vmem:[%s4] sm:$0xf]
        %v1619 = vld [vmem:[%s4 + $0x4] sm:$0xf]
        %v1620 = vld [vmem:[%s4 + $0x8] sm:$0xf]
        %v1621 = vld [vmem:[%s4 + $0xc] sm:$0xf]
        %v1622 = vld [vmem:[%s4 + $0x10] sm:$0x3]
        %v1623 = vld [vmem:[%s14] sm:$0x1]
        %v1625 = vlaneseq
        %v1626 = vshrl.u32 %v1625, 7
        %v1627 = vsub.s32 0, %v1626
        %v1628 = vrot.slane %v1623, %v1627
        %v1635 = vunpack.c.l.b16 %v1618
        %v1636 = vunpack.c.l.b16 %v1619
        %v1637 = vunpack.c.l.b16 %v1620
        %v1638 = vunpack.c.l.b16 %v1621
        %v1639 = vunpack.c.l.b16 %v1622
        %v1640 = vpack.c.b16 %v1636, %v1635
        %v1641 = vpack.c.b16 %v1638, %v1637
        %v1642 = vpack.c.b16 %v1639, %v1639
        %vm1645 = vcmask 293888
        %v1647 = vsel %vm1645, %v1617, 0
        %vm1649 = vcmask 1041408
        %v1651 = vsel %vm1649, %v1642, 0
        %1653 = vmatprep.subr.bf16.mxu0 0
        %1654 = vmatpush1.bf16.msra.mxu0 0
        %1655 = vmatprep.subr.bf16.mxu0 0
        %1656 = vmatpush1.bf16.msra.mxu0 0
        %1657 = vmatprep.subr.bf16.mxu0 0
        %1658 = vmatpush1.bf16.msra.mxu0 0
        %1659 = vmatprep.subr.bf16.mxu0 0
        %1660 = vmatpush1.bf16.msra.mxu0 0
        %1661 = vmatprep.subr.bf16.mxu0 0
        %1662 = vmatpush1.bf16.msra.mxu0 0
        %1663 = vmatprep.subr.bf16.mxu0 0
        %1664 = vmatpush1.bf16.msra.mxu0 %v1651
        %1665 = vmatprep.subr.bf16.mxu0 0
        %1666 = vmatpush1.bf16.msra.mxu0 %v1641
        %1667 = vmatprep.subr.bf16.mxu0 0
        %1668 = vmatpush1.bf16.msra.mxu0 %v1640
        %1669 = vmatprep.subr.bf16.mxu0 0
        %1670 = vmatpush2.bf16.msra.mxu0 0
        %1671 = vmatprep.subr.bf16.mxu0 0
        %1672 = vmatpush2.bf16.msra.mxu0 0
        %1673 = vmatprep.subr.bf16.mxu0 0
        %1674 = vmatpush2.bf16.msra.mxu0 0
        %1675 = vmatprep.subr.bf16.mxu0 0
        %1676 = vmatpush2.bf16.msra.mxu0 0
        %1677 = vmatprep.subr.bf16.mxu0 0
        %1678 = vmatpush2.bf16.msra.mxu0 0
        %1679 = vmatprep.subr.bf16.mxu0 0
        %1680 = vmatpush2.bf16.msra.mxu0 0
        %1681 = vmatprep.subr.bf16.mxu0 0
        %1682 = vmatpush2.bf16.msra.mxu0 0
        %1683 = vmatprep.subr.bf16.mxu0 0
        %1684 = vmatpush2.bf16.msra.mxu0 0
        %1685 = vmatprep.mubr.bf16.mxu0 0
        %1686 = vmatmul.mubr.bf16.gmra.mxu0 %v1647
        %v1687 = vpop.f32.mrf.mxu0
        %v1688 = vadd.f32 %v1628, %v1687
        %v1689 = vpop.f32.mrf.mxu0
        %v1690 = vpop.f32.mrf.mxu0
        %v1691 = vadd.f32 %v1628, %v1690
        %v1692 = vpop.f32.mrf.mxu0
        %1693 = vdwg.mxu0
        %v1694 = vmax.f32 %v1688, 0.0
        %v1695 = vmax.f32 %v1691, 0.0
        %v1696 = vpack.c.bf16 %v1695, %v1694
        %v1697 = vld [vmem:[%s5] sm:$0xf]
        %v1698 = vld [vmem:[%s5 + $0x4] sm:$0xf]
        %v1699 = vld [vmem:[%s5 + $0x8] sm:$0x1]
        %v1700 = vld [vmem:[%s15] sm:$0x1]
        %v1702 = vlaneseq
        %v1703 = vshrl.u32 %v1702, 7
        %v1704 = vsub.s32 0, %v1703
        %v1705 = vrot.slane %v1700, %v1704
        %v1710 = vunpack.c.l.b16 %v1697
        %v1711 = vunpack.c.l.b16 %v1698
        %v1712 = vunpack.c.l.b16 %v1699
        %v1713 = vpack.c.b16 %v1711, %v1710
        %v1714 = vpack.c.b16 %v1712, %v1712
        %vm1716 = vcmask 146432
        %v1718 = vsel %vm1716, %v1696, 0
        %vm1720 = vcmask 1040384
        %v1722 = vsel %vm1720, %v1714, 0
        %1724 = vmatprep.subr.bf16.mxu0 0
        %1725 = vmatpush1.bf16.msra.mxu0 0
        %1726 = vmatprep.subr.bf16.mxu0 0
        %1727 = vmatpush1.bf16.msra.mxu0 0
        %1728 = vmatprep.subr.bf16.mxu0 0
        %1729 = vmatpush1.bf16.msra.mxu0 0
        %1730 = vmatprep.subr.bf16.mxu0 0
        %1731 = vmatpush1.bf16.msra.mxu0 0
        %1732 = vmatprep.subr.bf16.mxu0 0
        %1733 = vmatpush1.bf16.msra.mxu0 0
        %1734 = vmatprep.subr.bf16.mxu0 0
        %1735 = vmatpush1.bf16.msra.mxu0 0
        %1736 = vmatprep.subr.bf16.mxu0 0
        %1737 = vmatpush1.bf16.msra.mxu0 %v1722
        %1738 = vmatprep.subr.bf16.mxu0 0
        %1739 = vmatpush1.bf16.msra.mxu0 %v1713
        %1740 = vmatprep.subr.bf16.mxu0 0
        %1741 = vmatpush2.bf16.msra.mxu0 0
        %1742 = vmatprep.subr.bf16.mxu0 0
        %1743 = vmatpush2.bf16.msra.mxu0 0
        %1744 = vmatprep.subr.bf16.mxu0 0
        %1745 = vmatpush2.bf16.msra.mxu0 0
        %1746 = vmatprep.subr.bf16.mxu0 0
        %1747 = vmatpush2.bf16.msra.mxu0 0
        %1748 = vmatprep.subr.bf16.mxu0 0
        %1749 = vmatpush2.bf16.msra.mxu0 0
        %1750 = vmatprep.subr.bf16.mxu0 0
        %1751 = vmatpush2.bf16.msra.mxu0 0
        %1752 = vmatprep.subr.bf16.mxu0 0
        %1753 = vmatpush2.bf16.msra.mxu0 0
        %1754 = vmatprep.subr.bf16.mxu0 0
        %1755 = vmatpush2.bf16.msra.mxu0 0
        %1756 = vmatprep.mubr.bf16.mxu0 0
        %1757 = vmatmul.mubr.bf16.gmra.mxu0 %v1718
        %v1758 = vpop.f32.mrf.mxu0
        %v1759 = vadd.f32 %v1705, %v1758
        %v1760 = vpop.f32.mrf.mxu0
        %v1761 = vpop.f32.mrf.mxu0
        %v1762 = vadd.f32 %v1705, %v1761
        %v1763 = vpop.f32.mrf.mxu0
        %1764 = vdwg.mxu0
        %v1765 = vpack.c.bf16 %v1762, %v1759
        %v1766 = vld [vmem:[#allocation5] sm:$0xf]
        %v1767 = vld [vmem:[#allocation5 + $0x4] sm:$0x1]
        %v1768 = vld [vmem:[%s16] sm:$0x1]
        %v1770 = vlaneseq
        %v1771 = vshrl.u32 %v1770, 7
        %v1772 = vsub.s32 0, %v1771
        %v1773 = vrot.slane %v1768, %v1772
        %v1777 = vunpack.c.l.b16 %v1766
        %v1778 = vunpack.c.l.b16 %v1767
        %v1779 = vpack.c.b16 %v1778, %v1777
        %vm1780 = vcmask 72704
        %v1782 = vsel %vm1780, %v1765, 0
        %vm1784 = vcmask 1043456
        %vm1785 = vcmask 1044480
        %v1786 = vsel %vm1784, 4294967295, 65535
        %v1787 = vsel %vm1785, %v1786, 0
        %v1789 = vand.u32 %v1779, %v1787
        %1791 = vmatprep.subr.bf16.mxu0 0
        %1792 = vmatpush1.bf16.msra.mxu0 0
        %1793 = vmatprep.subr.bf16.mxu0 0
        %1794 = vmatpush1.bf16.msra.mxu0 0
        %1795 = vmatprep.subr.bf16.mxu0 0
        %1796 = vmatpush1.bf16.msra.mxu0 0
        %1797 = vmatprep.subr.bf16.mxu0 0
        %1798 = vmatpush1.bf16.msra.mxu0 0
        %1799 = vmatprep.subr.bf16.mxu0 0
        %1800 = vmatpush1.bf16.msra.mxu0 0
        %1801 = vmatprep.subr.bf16.mxu0 0
        %1802 = vmatpush1.bf16.msra.mxu0 0
        %1803 = vmatprep.subr.bf16.mxu0 0
        %1804 = vmatpush1.bf16.msra.mxu0 0
        %1805 = vmatprep.subr.bf16.mxu0 0
        %1806 = vmatpush1.bf16.msra.mxu0 %v1789
        %1807 = vmatprep.subr.bf16.mxu0 0
        %1808 = vmatpush2.bf16.msra.mxu0 0
        %1809 = vmatprep.subr.bf16.mxu0 0
        %1810 = vmatpush2.bf16.msra.mxu0 0
        %1811 = vmatprep.subr.bf16.mxu0 0
        %1812 = vmatpush2.bf16.msra.mxu0 0
        %1813 = vmatprep.subr.bf16.mxu0 0
        %1814 = vmatpush2.bf16.msra.mxu0 0
        %1815 = vmatprep.subr.bf16.mxu0 0
        %1816 = vmatpush2.bf16.msra.mxu0 0
        %1817 = vmatprep.subr.bf16.mxu0 0
        %1818 = vmatpush2.bf16.msra.mxu0 0
        %1819 = vmatprep.subr.bf16.mxu0 0
        %1820 = vmatpush2.bf16.msra.mxu0 0
        %1821 = vmatprep.subr.bf16.mxu0 0
        %1822 = vmatpush2.bf16.msra.mxu0 0
        %1823 = vmatprep.mubr.bf16.mxu0 0
        %1824 = vmatmul.mubr.bf16.gmra.mxu0 %v1782
        %v1825 = vpop.f32.mrf.mxu0
        %v1826 = vadd.f32 %v1773, %v1825
        %v1827 = vpop.f32.mrf.mxu0
        %v1828 = vpop.f32.mrf.mxu0
        %v1829 = vadd.f32 %v1773, %v1828
        %v1830 = vpop.f32.mrf.mxu0
        %1831 = vdwg.mxu0
        %v1832 = vmax.f32 %v1826, 0.0
        %v1833 = vmax.f32 %v1829, 0.0
        %v1834 = vpack.c.bf16 %v1833, %v1832
        %v1835 = vld [vmem:[#allocation7] sm:$0xf]
        %v1836 = vld [vmem:[#allocation7 + $0x4] sm:$0xf]
        %v1837 = vld [vmem:[#allocation7 + $0x8] sm:$0x1]
        %v1838 = vld [vmem:[%s17] sm:$0x1]
        %v1840 = vlaneseq
        %v1841 = vshrl.u32 %v1840, 7
        %v1842 = vsub.s32 0, %v1841
        %v1843 = vrot.slane %v1838, %v1842
        %v1848 = vunpack.c.l.b16 %v1835
        %v1849 = vunpack.c.l.b16 %v1836
        %v1850 = vunpack.c.l.b16 %v1837
        %v1851 = vpack.c.b16 %v1849, %v1848
        %v1852 = vpack.c.b16 %v1850, %v1850
        %v1855 = vsel %vm1716, %v1834, 0
        %v1858 = vsel %vm1720, %v1852, 0
        %1860 = vmatprep.subr.bf16.mxu0 0
        %1861 = vmatpush1.bf16.msra.mxu0 0
        %1862 = vmatprep.subr.bf16.mxu0 0
        %1863 = vmatpush1.bf16.msra.mxu0 0
        %1864 = vmatprep.subr.bf16.mxu0 0
        %1865 = vmatpush1.bf16.msra.mxu0 0
        %1866 = vmatprep.subr.bf16.mxu0 0
        %1867 = vmatpush1.bf16.msra.mxu0 0
        %1868 = vmatprep.subr.bf16.mxu0 0
        %1869 = vmatpush1.bf16.msra.mxu0 0
        %1870 = vmatprep.subr.bf16.mxu0 0
        %1871 = vmatpush1.bf16.msra.mxu0 0
        %1872 = vmatprep.subr.bf16.mxu0 0
        %1873 = vmatpush1.bf16.msra.mxu0 %v1858
        %1874 = vmatprep.subr.bf16.mxu0 0
        %1875 = vmatpush1.bf16.msra.mxu0 %v1851
        %1876 = vmatprep.subr.bf16.mxu0 0
        %1877 = vmatpush2.bf16.msra.mxu0 0
        %1878 = vmatprep.subr.bf16.mxu0 0
        %1879 = vmatpush2.bf16.msra.mxu0 0
        %1880 = vmatprep.subr.bf16.mxu0 0
        %1881 = vmatpush2.bf16.msra.mxu0 0
        %1882 = vmatprep.subr.bf16.mxu0 0
        %1883 = vmatpush2.bf16.msra.mxu0 0
        %1884 = vmatprep.subr.bf16.mxu0 0
        %1885 = vmatpush2.bf16.msra.mxu0 0
        %1886 = vmatprep.subr.bf16.mxu0 0
        %1887 = vmatpush2.bf16.msra.mxu0 0
        %1888 = vmatprep.subr.bf16.mxu0 0
        %1889 = vmatpush2.bf16.msra.mxu0 0
        %1890 = vmatprep.subr.bf16.mxu0 0
        %1891 = vmatpush2.bf16.msra.mxu0 0
        %1892 = vmatprep.mubr.bf16.mxu0 0
        %1893 = vmatmul.mubr.bf16.gmra.mxu0 %v1855
        %v1894 = vpop.f32.mrf.mxu0
        %v1895 = vadd.f32 %v1843, %v1894
        %v1896 = vpop.f32.mrf.mxu0
        %v1897 = vpop.f32.mrf.mxu0
        %v1898 = vadd.f32 %v1843, %v1897
        %v1899 = vpop.f32.mrf.mxu0
        %1900 = vdwg.mxu0
        %v1901 = vmax.f32 %v1895, 0.0
        %v1902 = vmax.f32 %v1898, 0.0
        %v1903 = vpack.c.bf16 %v1902, %v1901
        %v1904 = vld [vmem:[#allocation8] sm:$0xf]
        %v1905 = vld [vmem:[#allocation8 + $0x4] sm:$0xf]
        %v1906 = vld [vmem:[#allocation8 + $0x8] sm:$0xf]
        %v1907 = vld [vmem:[#allocation8 + $0xc] sm:$0xf]
        %v1908 = vld [vmem:[#allocation8 + $0x10] sm:$0x3]
        %v1909 = vld [vmem:[%s18] sm:$0x1]
        %v1911 = vlaneseq
        %v1912 = vshrl.u32 %v1911, 7
        %v1913 = vsub.s32 0, %v1912
        %v1914 = vrot.slane %v1909, %v1913
        %v1921 = vunpack.c.l.b16 %v1904
        %v1922 = vunpack.c.l.b16 %v1905
        %v1923 = vunpack.c.l.b16 %v1906
        %v1924 = vunpack.c.l.b16 %v1907
        %v1925 = vunpack.c.l.b16 %v1908
        %v1926 = vpack.c.b16 %v1922, %v1921
        %v1927 = vpack.c.b16 %v1924, %v1923
        %v1928 = vpack.c.b16 %v1925, %v1925
        %v1932 = vsel %vm1645, %v1903, 0
        %v1935 = vsel %vm1649, %v1928, 0
        %1937 = vmatprep.subr.bf16.mxu0 0
        %1938 = vmatpush1.bf16.msra.mxu0 0
        %1939 = vmatprep.subr.bf16.mxu0 0
        %1940 = vmatpush1.bf16.msra.mxu0 0
        %1941 = vmatprep.subr.bf16.mxu0 0
        %1942 = vmatpush1.bf16.msra.mxu0 0
        %1943 = vmatprep.subr.bf16.mxu0 0
        %1944 = vmatpush1.bf16.msra.mxu0 0
        %1945 = vmatprep.subr.bf16.mxu0 0
        %1946 = vmatpush1.bf16.msra.mxu0 0
        %1947 = vmatprep.subr.bf16.mxu0 0
        %1948 = vmatpush1.bf16.msra.mxu0 %v1935
        %1949 = vmatprep.subr.bf16.mxu0 0
        %1950 = vmatpush1.bf16.msra.mxu0 %v1927
        %1951 = vmatprep.subr.bf16.mxu0 0
        %1952 = vmatpush1.bf16.msra.mxu0 %v1926
        %1953 = vmatprep.subr.bf16.mxu0 0
        %1954 = vmatpush2.bf16.msra.mxu0 0
        %1955 = vmatprep.subr.bf16.mxu0 0
        %1956 = vmatpush2.bf16.msra.mxu0 0
        %1957 = vmatprep.subr.bf16.mxu0 0
        %1958 = vmatpush2.bf16.msra.mxu0 0
        %1959 = vmatprep.subr.bf16.mxu0 0
        %1960 = vmatpush2.bf16.msra.mxu0 0
        %1961 = vmatprep.subr.bf16.mxu0 0
        %1962 = vmatpush2.bf16.msra.mxu0 0
        %1963 = vmatprep.subr.bf16.mxu0 0
        %1964 = vmatpush2.bf16.msra.mxu0 0
        %1965 = vmatprep.subr.bf16.mxu0 0
        %1966 = vmatpush2.bf16.msra.mxu0 0
        %1967 = vmatprep.subr.bf16.mxu0 0
        %1968 = vmatpush2.bf16.msra.mxu0 0
        %1969 = vmatprep.mubr.bf16.mxu0 0
        %1970 = vmatmul.mubr.bf16.gmra.mxu0 %v1932
        %v1971 = vpop.f32.mrf.mxu0
        %v1972 = vadd.f32 %v1914, %v1971
        %v1973 = vpop.f32.mrf.mxu0
        %v1974 = vpop.f32.mrf.mxu0
        %v1975 = vadd.f32 %v1914, %v1974
        %v1976 = vpop.f32.mrf.mxu0
        %1977 = vdwg.mxu0
        %v1978 = vmax.f32 %v1972, 0.0
        %v1979 = vmax.f32 %v1975, 0.0
        %v1980 = vpack.c.bf16 %v1979, %v1978
        %v1981 = vld [vmem:[#allocation10] sm:$0xf]
        %v1982 = vld [vmem:[#allocation10 + $0x4] sm:$0xf]
        %v1983 = vld [vmem:[#allocation10 + $0x8] sm:$0xf]
        %v1984 = vld [vmem:[#allocation10 + $0xc] sm:$0xf]
        %v1985 = vld [vmem:[#allocation10 + $0x10] sm:$0xf]
        %v1986 = vld [vmem:[#allocation10 + $0x14] sm:$0xf]
        %v1987 = vld [vmem:[#allocation10 + $0x18] sm:$0xf]
        %v1988 = vld [vmem:[#allocation10 + $0x1c] sm:$0xf]
        %v1989 = vld [vmem:[%s19] sm:$0x1]
        %v1991 = vlaneseq
        %v1992 = vshrl.u32 %v1991, 7
        %v1993 = vsub.s32 0, %v1992
        %v1994 = vrot.slane %v1989, %v1993
        %v2004 = vunpack.c.l.b16 %v1981
        %v2005 = vunpack.c.l.b16 %v1982
        %v2006 = vunpack.c.l.b16 %v1983
        %v2007 = vunpack.c.l.b16 %v1984
        %v2008 = vunpack.c.l.b16 %v1985
        %v2009 = vunpack.c.l.b16 %v1986
        %v2010 = vunpack.c.l.b16 %v1987
        %v2011 = vunpack.c.l.b16 %v1988
        %v2012 = vpack.c.b16 %v2005, %v2004
        %v2013 = vpack.c.b16 %v2007, %v2006
        %v2014 = vpack.c.b16 %v2009, %v2008
        %v2015 = vpack.c.b16 %v2011, %v2010
        %v2021 = vsel %vm1570, %v1980, 0
        %2023 = vmatprep.subr.bf16.mxu0 0
        %2024 = vmatpush1.bf16.msra.mxu0 0
        %2025 = vmatprep.subr.bf16.mxu0 0
        %2026 = vmatpush1.bf16.msra.mxu0 0
        %2027 = vmatprep.subr.bf16.mxu0 0
        %2028 = vmatpush1.bf16.msra.mxu0 0
        %2029 = vmatprep.subr.bf16.mxu0 0
        %2030 = vmatpush1.bf16.msra.mxu0 0
        %2031 = vmatprep.subr.bf16.mxu0 0
        %2032 = vmatpush1.bf16.msra.mxu0 %v2015
        %2033 = vmatprep.subr.bf16.mxu0 0
        %2034 = vmatpush1.bf16.msra.mxu0 %v2014
        %2035 = vmatprep.subr.bf16.mxu0 0
        %2036 = vmatpush1.bf16.msra.mxu0 %v2013
        %2037 = vmatprep.subr.bf16.mxu0 0
        %2038 = vmatpush1.bf16.msra.mxu0 %v2012
        %2039 = vmatprep.subr.bf16.mxu0 0
        %2040 = vmatpush2.bf16.msra.mxu0 0
        %2041 = vmatprep.subr.bf16.mxu0 0
        %2042 = vmatpush2.bf16.msra.mxu0 0
        %2043 = vmatprep.subr.bf16.mxu0 0
        %2044 = vmatpush2.bf16.msra.mxu0 0
        %2045 = vmatprep.subr.bf16.mxu0 0
        %2046 = vmatpush2.bf16.msra.mxu0 0
        %2047 = vmatprep.subr.bf16.mxu0 0
        %2048 = vmatpush2.bf16.msra.mxu0 0
        %2049 = vmatprep.subr.bf16.mxu0 0
        %2050 = vmatpush2.bf16.msra.mxu0 0
        %2051 = vmatprep.subr.bf16.mxu0 0
        %2052 = vmatpush2.bf16.msra.mxu0 0
        %2053 = vmatprep.subr.bf16.mxu0 0
        %2054 = vmatpush2.bf16.msra.mxu0 0
        %2055 = vmatprep.mubr.bf16.mxu0 0
        %2056 = vmatmul.mubr.bf16.gmra.mxu0 %v2021
        %v2057 = vpop.f32.mrf.mxu0
        %v2058 = vadd.f32 %v1994, %v2057
        %v2059 = vpop.f32.mrf.mxu0
        %v2060 = vpop.f32.mrf.mxu0
        %v2061 = vadd.f32 %v1994, %v2060
        %v2062 = vpop.f32.mrf.mxu0
        %2063 = vdwg.mxu0
        %v2064 = vmax.f32 %v2058, 0.0
        %v2065 = vmax.f32 %v2061, 0.0
        %v2066 = vpack.c.bf16 %v2065, %v2064
        %v2067 = vld [vmem:[#allocation11] sm:$0xff]
        %v2068 = vld [vmem:[#allocation11 + $0x8] sm:$0xff]
        %v2069 = vld [vmem:[#allocation11 + $0x10] sm:$0xff]
        %v2070 = vld [vmem:[#allocation11 + $0x18] sm:$0xf]
        %v2071 = vld [vmem:[#allocation11 + $0x1c] sm:$0xff]
        %v2072 = vld [vmem:[#allocation11 + $0x24] sm:$0xff]
        %v2073 = vld [vmem:[#allocation11 + $0x2c] sm:$0xff]
        %v2074 = vld [vmem:[#allocation11 + $0x34] sm:$0xf]
        %v2075 = vld [vmem:[#allocation11 + $0x38] sm:$0xff]
        %v2076 = vld [vmem:[#allocation11 + $0x40] sm:$0xff]
        %v2077 = vld [vmem:[#allocation11 + $0x48] sm:$0xff]
        %v2078 = vld [vmem:[#allocation11 + $0x50] sm:$0xf]
        %v2079 = vld [vmem:[#allocation11 + $0x54] sm:$0xff]
        %v2080 = vld [vmem:[#allocation11 + $0x5c] sm:$0xff]
        %v2081 = vld [vmem:[#allocation11 + $0x64] sm:$0xff]
        %v2082 = vld [vmem:[#allocation11 + $0x6c] sm:$0xf]
        %v2083 = vld [vmem:[#allocation11 + $0x70] sm:$0xff]
        %v2084 = vld [vmem:[#allocation11 + $0x78] sm:$0xff]
        %v2085 = vld [vmem:[#allocation11 + $0x80] sm:$0xff]
        %v2086 = vld [vmem:[#allocation11 + $0x88] sm:$0xf]
        %v2087 = vld [vmem:[#allocation11 + $0x8c] sm:$0xff]
        %v2088 = vld [vmem:[#allocation11 + $0x94] sm:$0xff]
        %v2089 = vld [vmem:[#allocation11 + $0x9c] sm:$0xff]
        %v2090 = vld [vmem:[#allocation11 + $0xa4] sm:$0xf]
        %v2091 = vld [vmem:[#allocation11 + $0xa8] sm:$0xff]
        %v2092 = vld [vmem:[#allocation11 + $0xb0] sm:$0xff]
        %v2093 = vld [vmem:[#allocation11 + $0xb8] sm:$0xff]
        %v2094 = vld [vmem:[#allocation11 + $0xc0] sm:$0xf]
        %v2095 = vld [vmem:[#allocation11 + $0xc4] sm:$0xff]
        %v2096 = vld [vmem:[#allocation11 + $0xcc] sm:$0xff]
        %v2097 = vld [vmem:[#allocation11 + $0xd4] sm:$0xff]
        %v2098 = vld [vmem:[#allocation11 + $0xdc] sm:$0xf]
        %v2099 = vld [vmem:[#allocation11 + $0xe0] sm:$0xff]
        %v2100 = vld [vmem:[#allocation11 + $0xe8] sm:$0xff]
        %v2101 = vld [vmem:[#allocation11 + $0xf0] sm:$0xff]
        %v2102 = vld [vmem:[#allocation11 + $0xf8] sm:$0xf]
        %v2103 = vld [vmem:[#allocation11 + $0xfc] sm:$0xff]
        %v2104 = vld [vmem:[#allocation11 + $0x104] sm:$0xff]
        %v2105 = vld [vmem:[#allocation11 + $0x10c] sm:$0xff]
        %v2106 = vld [vmem:[#allocation11 + $0x114] sm:$0xf]
        %v2107 = vld [vmem:[#allocation11 + $0x118] sm:$0xff]
        %v2108 = vld [vmem:[#allocation11 + $0x120] sm:$0xff]
        %v2109 = vld [vmem:[#allocation11 + $0x128] sm:$0xff]
        %v2110 = vld [vmem:[#allocation11 + $0x130] sm:$0xf]
        %v2111 = vld [vmem:[#allocation11 + $0x134] sm:$0xff]
        %v2112 = vld [vmem:[#allocation11 + $0x13c] sm:$0xff]
        %v2113 = vld [vmem:[#allocation11 + $0x144] sm:$0xff]
        %v2114 = vld [vmem:[#allocation11 + $0x14c] sm:$0xf]
        %v2115 = vld [vmem:[#allocation11 + $0x150] sm:$0xff]
        %v2116 = vld [vmem:[#allocation11 + $0x158] sm:$0xff]
        %v2117 = vld [vmem:[#allocation11 + $0x160] sm:$0xff]
        %v2118 = vld [vmem:[#allocation11 + $0x168] sm:$0xf]
        %v2119 = vld [vmem:[#allocation11 + $0x16c] sm:$0xff]
        %v2120 = vld [vmem:[#allocation11 + $0x174] sm:$0xff]
        %v2121 = vld [vmem:[#allocation11 + $0x17c] sm:$0xff]
        %v2122 = vld [vmem:[#allocation11 + $0x184] sm:$0xf]
        %v2123 = vld [vmem:[#allocation11 + $0x188] sm:$0xff]
        %v2124 = vld [vmem:[#allocation11 + $0x190] sm:$0xff]
        %v2125 = vld [vmem:[#allocation11 + $0x198] sm:$0xff]
        %v2126 = vld [vmem:[#allocation11 + $0x1a0] sm:$0xf]
        %v2127 = vld [vmem:[#allocation11 + $0x1a4] sm:$0xff]
        %v2128 = vld [vmem:[#allocation11 + $0x1ac] sm:$0xff]
        %v2129 = vld [vmem:[#allocation11 + $0x1b4] sm:$0xff]
        %v2130 = vld [vmem:[#allocation11 + $0x1bc] sm:$0xf]
        %v2131 = vld [vmem:[%s20] sm:$0xff]
        %v2133 = vlaneseq
        %v2134 = vshrl.u32 %v2133, 7
        %v2135 = vsub.s32 0, %v2134
        %v2136 = vrot.slane %v2131, %v2135
        %v2137 = vlaneseq
        %v2138 = vshrl.u32 %v2137, 7
        %v2139 = vsub.s32 1, %v2138
        %v2140 = vrot.slane %v2131, %v2139
        %v2141 = vlaneseq
        %v2142 = vshrl.u32 %v2141, 7
        %v2143 = vsub.s32 2, %v2142
        %v2144 = vrot.slane %v2131, %v2143
        %v2145 = vlaneseq
        %v2146 = vshrl.u32 %v2145, 7
        %v2147 = vsub.s32 3, %v2146
        %v2148 = vrot.slane %v2131, %v2147
        %v2149 = vlaneseq
        %v2150 = vshrl.u32 %v2149, 7
        %v2151 = vsub.s32 4, %v2150
        %v2152 = vrot.slane %v2131, %v2151
        %v2153 = vlaneseq
        %v2154 = vshrl.u32 %v2153, 7
        %v2155 = vsub.s32 5, %v2154
        %v2156 = vrot.slane %v2131, %v2155
        %v2157 = vlaneseq
        %v2158 = vshrl.u32 %v2157, 7
        %v2159 = vsub.s32 6, %v2158
        %v2160 = vrot.slane %v2131, %v2159
        %v2232 = vunpack.c.l.b16 %v2067
        %v2233 = vunpack.c.h.b16 %v2067
        %v2234 = vunpack.c.l.b16 %v2068
        %v2235 = vunpack.c.h.b16 %v2068
        %v2236 = vunpack.c.l.b16 %v2069
        %v2237 = vunpack.c.h.b16 %v2069
        %v2238 = vunpack.c.l.b16 %v2070
        %v2239 = vunpack.c.l.b16 %v2071
        %v2240 = vunpack.c.h.b16 %v2071
        %v2241 = vunpack.c.l.b16 %v2072
        %v2242 = vunpack.c.h.b16 %v2072
        %v2243 = vunpack.c.l.b16 %v2073
        %v2244 = vunpack.c.h.b16 %v2073
        %v2245 = vunpack.c.l.b16 %v2074
        %v2246 = vunpack.c.l.b16 %v2075
        %v2247 = vunpack.c.h.b16 %v2075
        %v2248 = vunpack.c.l.b16 %v2076
        %v2249 = vunpack.c.h.b16 %v2076
        %v2250 = vunpack.c.l.b16 %v2077
        %v2251 = vunpack.c.h.b16 %v2077
        %v2252 = vunpack.c.l.b16 %v2078
        %v2253 = vunpack.c.l.b16 %v2079
        %v2254 = vunpack.c.h.b16 %v2079
        %v2255 = vunpack.c.l.b16 %v2080
        %v2256 = vunpack.c.h.b16 %v2080
        %v2257 = vunpack.c.l.b16 %v2081
        %v2258 = vunpack.c.h.b16 %v2081
        %v2259 = vunpack.c.l.b16 %v2082
        %v2260 = vunpack.c.l.b16 %v2083
        %v2261 = vunpack.c.h.b16 %v2083
        %v2262 = vunpack.c.l.b16 %v2084
        %v2263 = vunpack.c.h.b16 %v2084
        %v2264 = vunpack.c.l.b16 %v2085
        %v2265 = vunpack.c.h.b16 %v2085
        %v2266 = vunpack.c.l.b16 %v2086
        %v2267 = vunpack.c.l.b16 %v2087
        %v2268 = vunpack.c.h.b16 %v2087
        %v2269 = vunpack.c.l.b16 %v2088
        %v2270 = vunpack.c.h.b16 %v2088
        %v2271 = vunpack.c.l.b16 %v2089
        %v2272 = vunpack.c.h.b16 %v2089
        %v2273 = vunpack.c.l.b16 %v2090
        %v2274 = vunpack.c.l.b16 %v2091
        %v2275 = vunpack.c.h.b16 %v2091
        %v2276 = vunpack.c.l.b16 %v2092
        %v2277 = vunpack.c.h.b16 %v2092
        %v2278 = vunpack.c.l.b16 %v2093
        %v2279 = vunpack.c.h.b16 %v2093
        %v2280 = vunpack.c.l.b16 %v2094
        %v2281 = vunpack.c.l.b16 %v2095
        %v2282 = vunpack.c.h.b16 %v2095
        %v2283 = vunpack.c.l.b16 %v2096
        %v2284 = vunpack.c.h.b16 %v2096
        %v2285 = vunpack.c.l.b16 %v2097
        %v2286 = vunpack.c.h.b16 %v2097
        %v2287 = vunpack.c.l.b16 %v2098
        %v2288 = vunpack.c.l.b16 %v2099
        %v2289 = vunpack.c.h.b16 %v2099
        %v2290 = vunpack.c.l.b16 %v2100
        %v2291 = vunpack.c.h.b16 %v2100
        %v2292 = vunpack.c.l.b16 %v2101
        %v2293 = vunpack.c.h.b16 %v2101
        %v2294 = vunpack.c.l.b16 %v2102
        %v2295 = vunpack.c.l.b16 %v2103
        %v2296 = vunpack.c.h.b16 %v2103
        %v2297 = vunpack.c.l.b16 %v2104
        %v2298 = vunpack.c.h.b16 %v2104
        %v2299 = vunpack.c.l.b16 %v2105
        %v2300 = vunpack.c.h.b16 %v2105
        %v2301 = vunpack.c.l.b16 %v2106
        %v2302 = vunpack.c.l.b16 %v2107
        %v2303 = vunpack.c.h.b16 %v2107
        %v2304 = vunpack.c.l.b16 %v2108
        %v2305 = vunpack.c.h.b16 %v2108
        %v2306 = vunpack.c.l.b16 %v2109
        %v2307 = vunpack.c.h.b16 %v2109
        %v2308 = vunpack.c.l.b16 %v2110
        %v2309 = vunpack.c.l.b16 %v2111
        %v2310 = vunpack.c.h.b16 %v2111
        %v2311 = vunpack.c.l.b16 %v2112
        %v2312 = vunpack.c.h.b16 %v2112
        %v2313 = vunpack.c.l.b16 %v2113
        %v2314 = vunpack.c.h.b16 %v2113
        %v2315 = vunpack.c.l.b16 %v2114
        %v2316 = vunpack.c.l.b16 %v2115
        %v2317 = vunpack.c.h.b16 %v2115
        %v2318 = vunpack.c.l.b16 %v2116
        %v2319 = vunpack.c.h.b16 %v2116
        %v2320 = vunpack.c.l.b16 %v2117
        %v2321 = vunpack.c.h.b16 %v2117
        %v2322 = vunpack.c.l.b16 %v2118
        %v2323 = vunpack.c.l.b16 %v2119
        %v2324 = vunpack.c.h.b16 %v2119
        %v2325 = vunpack.c.l.b16 %v2120
        %v2326 = vunpack.c.h.b16 %v2120
        %v2327 = vunpack.c.l.b16 %v2121
        %v2328 = vunpack.c.h.b16 %v2121
        %v2329 = vunpack.c.l.b16 %v2122
        %v2330 = vunpack.c.l.b16 %v2123
        %v2331 = vunpack.c.h.b16 %v2123
        %v2332 = vunpack.c.l.b16 %v2124
        %v2333 = vunpack.c.h.b16 %v2124
        %v2334 = vunpack.c.l.b16 %v2125
        %v2335 = vunpack.c.h.b16 %v2125
        %v2336 = vunpack.c.l.b16 %v2126
        %v2337 = vunpack.c.l.b16 %v2127
        %v2338 = vunpack.c.h.b16 %v2127
        %v2339 = vunpack.c.l.b16 %v2128
        %v2340 = vunpack.c.h.b16 %v2128
        %v2341 = vunpack.c.l.b16 %v2129
        %v2342 = vunpack.c.h.b16 %v2129
        %v2343 = vunpack.c.l.b16 %v2130
        %v2344 = vpack.c.b16 %v2239, %v2232
        %v2345 = vpack.c.b16 %v2240, %v2233
        %v2346 = vpack.c.b16 %v2241, %v2234
        %v2347 = vpack.c.b16 %v2242, %v2235
        %v2348 = vpack.c.b16 %v2243, %v2236
        %v2349 = vpack.c.b16 %v2244, %v2237
        %v2350 = vpack.c.b16 %v2245, %v2238
        %v2351 = vpack.c.b16 %v2253, %v2246
        %v2352 = vpack.c.b16 %v2254, %v2247
        %v2353 = vpack.c.b16 %v2255, %v2248
        %v2354 = vpack.c.b16 %v2256, %v2249
        %v2355 = vpack.c.b16 %v2257, %v2250
        %v2356 = vpack.c.b16 %v2258, %v2251
        %v2357 = vpack.c.b16 %v2259, %v2252
        %v2358 = vpack.c.b16 %v2267, %v2260
        %v2359 = vpack.c.b16 %v2268, %v2261
        %v2360 = vpack.c.b16 %v2269, %v2262
        %v2361 = vpack.c.b16 %v2270, %v2263
        %v2362 = vpack.c.b16 %v2271, %v2264
        %v2363 = vpack.c.b16 %v2272, %v2265
        %v2364 = vpack.c.b16 %v2273, %v2266
        %v2365 = vpack.c.b16 %v2281, %v2274
        %v2366 = vpack.c.b16 %v2282, %v2275
        %v2367 = vpack.c.b16 %v2283, %v2276
        %v2368 = vpack.c.b16 %v2284, %v2277
        %v2369 = vpack.c.b16 %v2285, %v2278
        %v2370 = vpack.c.b16 %v2286, %v2279
        %v2371 = vpack.c.b16 %v2287, %v2280
        %v2372 = vpack.c.b16 %v2295, %v2288
        %v2373 = vpack.c.b16 %v2296, %v2289
        %v2374 = vpack.c.b16 %v2297, %v2290
        %v2375 = vpack.c.b16 %v2298, %v2291
        %v2376 = vpack.c.b16 %v2299, %v2292
        %v2377 = vpack.c.b16 %v2300, %v2293
        %v2378 = vpack.c.b16 %v2301, %v2294
        %v2379 = vpack.c.b16 %v2309, %v2302
        %v2380 = vpack.c.b16 %v2310, %v2303
        %v2381 = vpack.c.b16 %v2311, %v2304
        %v2382 = vpack.c.b16 %v2312, %v2305
        %v2383 = vpack.c.b16 %v2313, %v2306
        %v2384 = vpack.c.b16 %v2314, %v2307
        %v2385 = vpack.c.b16 %v2315, %v2308
        %v2386 = vpack.c.b16 %v2323, %v2316
        %v2387 = vpack.c.b16 %v2324, %v2317
        %v2388 = vpack.c.b16 %v2325, %v2318
        %v2389 = vpack.c.b16 %v2326, %v2319
        %v2390 = vpack.c.b16 %v2327, %v2320
        %v2391 = vpack.c.b16 %v2328, %v2321
        %v2392 = vpack.c.b16 %v2329, %v2322
        %v2393 = vpack.c.b16 %v2337, %v2330
        %v2394 = vpack.c.b16 %v2338, %v2331
        %v2395 = vpack.c.b16 %v2339, %v2332
        %v2396 = vpack.c.b16 %v2340, %v2333
        %v2397 = vpack.c.b16 %v2341, %v2334
        %v2398 = vpack.c.b16 %v2342, %v2335
        %v2399 = vpack.c.b16 %v2343, %v2336
        %2456 = vmatprep.subr.bf16.mxu0 %v2394
        %2457 = vmatpush1.bf16.msra.mxu0 %v2393
        %2458 = vmatprep.subr.bf16.mxu0 %v2387
        %2459 = vmatpush1.bf16.msra.mxu0 %v2386
        %2460 = vmatprep.subr.bf16.mxu0 %v2380
        %2461 = vmatpush1.bf16.msra.mxu0 %v2379
        %2462 = vmatprep.subr.bf16.mxu0 %v2373
        %2463 = vmatpush1.bf16.msra.mxu0 %v2372
        %2464 = vmatprep.subr.bf16.mxu0 %v2366
        %2465 = vmatpush1.bf16.msra.mxu0 %v2365
        %2466 = vmatprep.subr.bf16.mxu0 %v2359
        %2467 = vmatpush1.bf16.msra.mxu0 %v2358
        %2468 = vmatprep.subr.bf16.mxu0 %v2352
        %2469 = vmatpush1.bf16.msra.mxu0 %v2351
        %2470 = vmatprep.subr.bf16.mxu0 %v2345
        %2471 = vmatpush1.bf16.msra.mxu0 %v2344
        %2472 = vmatprep.subr.bf16.mxu0 0
        %2473 = vmatpush2.bf16.msra.mxu0 0
        %2474 = vmatprep.subr.bf16.mxu0 0
        %2475 = vmatpush2.bf16.msra.mxu0 0
        %2476 = vmatprep.subr.bf16.mxu0 0
        %2477 = vmatpush2.bf16.msra.mxu0 0
        %2478 = vmatprep.subr.bf16.mxu0 0
        %2479 = vmatpush2.bf16.msra.mxu0 0
        %2480 = vmatprep.subr.bf16.mxu0 0
        %2481 = vmatpush2.bf16.msra.mxu0 0
        %2482 = vmatprep.subr.bf16.mxu0 0
        %2483 = vmatpush2.bf16.msra.mxu0 0
        %2484 = vmatprep.subr.bf16.mxu0 0
        %2485 = vmatpush2.bf16.msra.mxu0 0
        %2486 = vmatprep.subr.bf16.mxu0 0
        %2487 = vmatpush2.bf16.msra.mxu0 0
        %2488 = vmatprep.mubr.bf16.mxu0 0
        %2489 = vmatmul.mubr.bf16.gmra.mxu0 %v2066
        %v2490 = vpop.f32.mrf.mxu0
        %v2491 = vadd.f32 %v2136, %v2490
        %v2492 = vpop.f32.mrf.mxu0
        %v2493 = vadd.f32 %v2140, %v2492
        %v2494 = vpop.f32.mrf.mxu0
        %v2495 = vadd.f32 %v2136, %v2494
        %v2496 = vpop.f32.mrf.mxu0
        %v2497 = vadd.f32 %v2140, %v2496
        %2498 = vdwg.mxu0
        %2499 = vmatprep.subr.bf16.mxu0 %v2396
        %2500 = vmatpush1.bf16.msra.mxu0 %v2395
        %2501 = vmatprep.subr.bf16.mxu0 %v2389
        %2502 = vmatpush1.bf16.msra.mxu0 %v2388
        %2503 = vmatprep.subr.bf16.mxu0 %v2382
        %2504 = vmatpush1.bf16.msra.mxu0 %v2381
        %2505 = vmatprep.subr.bf16.mxu0 %v2375
        %2506 = vmatpush1.bf16.msra.mxu0 %v2374
        %2507 = vmatprep.subr.bf16.mxu0 %v2368
        %2508 = vmatpush1.bf16.msra.mxu0 %v2367
        %2509 = vmatprep.subr.bf16.mxu0 %v2361
        %2510 = vmatpush1.bf16.msra.mxu0 %v2360
        %2511 = vmatprep.subr.bf16.mxu0 %v2354
        %2512 = vmatpush1.bf16.msra.mxu0 %v2353
        %2513 = vmatprep.subr.bf16.mxu0 %v2347
        %2514 = vmatpush1.bf16.msra.mxu0 %v2346
        %2515 = vmatprep.subr.bf16.mxu0 0
        %2516 = vmatpush2.bf16.msra.mxu0 0
        %2517 = vmatprep.subr.bf16.mxu0 0
        %2518 = vmatpush2.bf16.msra.mxu0 0
        %2519 = vmatprep.subr.bf16.mxu0 0
        %2520 = vmatpush2.bf16.msra.mxu0 0
        %2521 = vmatprep.subr.bf16.mxu0 0
        %2522 = vmatpush2.bf16.msra.mxu0 0
        %2523 = vmatprep.subr.bf16.mxu0 0
        %2524 = vmatpush2.bf16.msra.mxu0 0
        %2525 = vmatprep.subr.bf16.mxu0 0
        %2526 = vmatpush2.bf16.msra.mxu0 0
        %2527 = vmatprep.subr.bf16.mxu0 0
        %2528 = vmatpush2.bf16.msra.mxu0 0
        %2529 = vmatprep.subr.bf16.mxu0 0
        %2530 = vmatpush2.bf16.msra.mxu0 0
        %2531 = vmatprep.mubr.bf16.mxu0 0
        %2532 = vmatmul.mubr.bf16.gmra.mxu0 %v2066
        %v2533 = vpop.f32.mrf.mxu0
        %v2534 = vadd.f32 %v2144, %v2533
        %v2535 = vpop.f32.mrf.mxu0
        %v2536 = vadd.f32 %v2148, %v2535
        %v2537 = vpop.f32.mrf.mxu0
        %v2538 = vadd.f32 %v2144, %v2537
        %v2539 = vpop.f32.mrf.mxu0
        %v2540 = vadd.f32 %v2148, %v2539
        %2541 = vdwg.mxu0
        %2542 = vmatprep.subr.bf16.mxu0 %v2398
        %2543 = vmatpush1.bf16.msra.mxu0 %v2397
        %2544 = vmatprep.subr.bf16.mxu0 %v2391
        %2545 = vmatpush1.bf16.msra.mxu0 %v2390
        %2546 = vmatprep.subr.bf16.mxu0 %v2384
        %2547 = vmatpush1.bf16.msra.mxu0 %v2383
        %2548 = vmatprep.subr.bf16.mxu0 %v2377
        %2549 = vmatpush1.bf16.msra.mxu0 %v2376
        %2550 = vmatprep.subr.bf16.mxu0 %v2370
        %2551 = vmatpush1.bf16.msra.mxu0 %v2369
        %2552 = vmatprep.subr.bf16.mxu0 %v2363
        %2553 = vmatpush1.bf16.msra.mxu0 %v2362
        %2554 = vmatprep.subr.bf16.mxu0 %v2356
        %2555 = vmatpush1.bf16.msra.mxu0 %v2355
        %2556 = vmatprep.subr.bf16.mxu0 %v2349
        %2557 = vmatpush1.bf16.msra.mxu0 %v2348
        %2558 = vmatprep.subr.bf16.mxu0 0
        %2559 = vmatpush2.bf16.msra.mxu0 0
        %2560 = vmatprep.subr.bf16.mxu0 0
        %2561 = vmatpush2.bf16.msra.mxu0 0
        %2562 = vmatprep.subr.bf16.mxu0 0
        %2563 = vmatpush2.bf16.msra.mxu0 0
        %2564 = vmatprep.subr.bf16.mxu0 0
        %2565 = vmatpush2.bf16.msra.mxu0 0
        %2566 = vmatprep.subr.bf16.mxu0 0
        %2567 = vmatpush2.bf16.msra.mxu0 0
        %2568 = vmatprep.subr.bf16.mxu0 0
        %2569 = vmatpush2.bf16.msra.mxu0 0
        %2570 = vmatprep.subr.bf16.mxu0 0
        %2571 = vmatpush2.bf16.msra.mxu0 0
        %2572 = vmatprep.subr.bf16.mxu0 0
        %2573 = vmatpush2.bf16.msra.mxu0 0
        %2574 = vmatprep.mubr.bf16.mxu0 0
        %2575 = vmatmul.mubr.bf16.gmra.mxu0 %v2066
        %v2576 = vpop.f32.mrf.mxu0
        %v2577 = vadd.f32 %v2152, %v2576
        %v2578 = vpop.f32.mrf.mxu0
        %v2579 = vadd.f32 %v2156, %v2578
        %v2580 = vpop.f32.mrf.mxu0
        %v2581 = vadd.f32 %v2152, %v2580
        %v2582 = vpop.f32.mrf.mxu0
        %v2583 = vadd.f32 %v2156, %v2582
        %2584 = vdwg.mxu0
        %2585 = vmatprep.subr.bf16.mxu0 0
        %2586 = vmatpush1.bf16.msra.mxu0 %v2399
        %2587 = vmatprep.subr.bf16.mxu0 0
        %2588 = vmatpush1.bf16.msra.mxu0 %v2392
        %2589 = vmatprep.subr.bf16.mxu0 0
        %2590 = vmatpush1.bf16.msra.mxu0 %v2385
        %2591 = vmatprep.subr.bf16.mxu0 0
        %2592 = vmatpush1.bf16.msra.mxu0 %v2378
        %2593 = vmatprep.subr.bf16.mxu0 0
        %2594 = vmatpush1.bf16.msra.mxu0 %v2371
        %2595 = vmatprep.subr.bf16.mxu0 0
        %2596 = vmatpush1.bf16.msra.mxu0 %v2364
        %2597 = vmatprep.subr.bf16.mxu0 0
        %2598 = vmatpush1.bf16.msra.mxu0 %v2357
        %2599 = vmatprep.subr.bf16.mxu0 0
        %2600 = vmatpush1.bf16.msra.mxu0 %v2350
        %2601 = vmatprep.subr.bf16.mxu0 0
        %2602 = vmatpush2.bf16.msra.mxu0 0
        %2603 = vmatprep.subr.bf16.mxu0 0
        %2604 = vmatpush2.bf16.msra.mxu0 0
        %2605 = vmatprep.subr.bf16.mxu0 0
        %2606 = vmatpush2.bf16.msra.mxu0 0
        %2607 = vmatprep.subr.bf16.mxu0 0
        %2608 = vmatpush2.bf16.msra.mxu0 0
        %2609 = vmatprep.subr.bf16.mxu0 0
        %2610 = vmatpush2.bf16.msra.mxu0 0
        %2611 = vmatprep.subr.bf16.mxu0 0
        %2612 = vmatpush2.bf16.msra.mxu0 0
        %2613 = vmatprep.subr.bf16.mxu0 0
        %2614 = vmatpush2.bf16.msra.mxu0 0
        %2615 = vmatprep.subr.bf16.mxu0 0
        %2616 = vmatpush2.bf16.msra.mxu0 0
        %2617 = vmatprep.mubr.bf16.mxu0 0
        %2618 = vmatmul.mubr.bf16.gmra.mxu0 %v2066
        %v2619 = vpop.f32.mrf.mxu0
        %v2620 = vadd.f32 %v2160, %v2619
        %v2621 = vpop.f32.mrf.mxu0
        %v2622 = vpop.f32.mrf.mxu0
        %v2623 = vadd.f32 %v2160, %v2622
        %v2624 = vpop.f32.mrf.mxu0
        %2625 = vdwg.mxu0
        %v2626 = vxor.u32 %v2491, 2147483648
        %v2627 = vxor.u32 %v2493, 2147483648
        %v2628 = vxor.u32 %v2534, 2147483648
        %v2629 = vxor.u32 %v2536, 2147483648
        %v2630 = vxor.u32 %v2577, 2147483648
        %v2631 = vxor.u32 %v2579, 2147483648
        %v2632 = vxor.u32 %v2620, 2147483648
        %v2633 = vxor.u32 %v2495, 2147483648
        %v2634 = vxor.u32 %v2497, 2147483648
        %v2635 = vxor.u32 %v2538, 2147483648
        %v2636 = vxor.u32 %v2540, 2147483648
        %v2637 = vxor.u32 %v2581, 2147483648
        %v2638 = vxor.u32 %v2583, 2147483648
        %v2639 = vxor.u32 %v2623, 2147483648
        %v2640 = vmul.f32 %v2626, 1.442695
        %v2641 = vpow.pop %v2640
        %v2642 = vmul.f32 %v2627, 1.442695
        %v2643 = vpow.pop %v2642
        %v2644 = vmul.f32 %v2628, 1.442695
        %v2645 = vpow.pop %v2644
        %v2646 = vmul.f32 %v2629, 1.442695
        %v2647 = vpow.pop %v2646
        %v2648 = vmul.f32 %v2630, 1.442695
        %v2649 = vpow.pop %v2648
        %v2650 = vmul.f32 %v2631, 1.442695
        %v2651 = vpow.pop %v2650
        %v2652 = vmul.f32 %v2632, 1.442695
        %v2653 = vpow.pop %v2652
        %v2654 = vmul.f32 %v2633, 1.442695
        %v2655 = vpow.pop %v2654
        %v2656 = vmul.f32 %v2634, 1.442695
        %v2657 = vpow.pop %v2656
        %v2658 = vmul.f32 %v2635, 1.442695
        %v2659 = vpow.pop %v2658
        %v2660 = vmul.f32 %v2636, 1.442695
        %v2661 = vpow.pop %v2660
        %v2662 = vmul.f32 %v2637, 1.442695
        %v2663 = vpow.pop %v2662
        %v2664 = vmul.f32 %v2638, 1.442695
        %v2665 = vpow.pop %v2664
        %v2666 = vmul.f32 %v2639, 1.442695
        %v2667 = vpow.pop %v2666
        %v2668 = vadd.f32 %v2641, 1.0
        %v2669 = vadd.f32 %v2643, 1.0
        %v2670 = vadd.f32 %v2645, 1.0
        %v2671 = vadd.f32 %v2647, 1.0
        %v2672 = vadd.f32 %v2649, 1.0
        %v2673 = vadd.f32 %v2651, 1.0
        %v2674 = vadd.f32 %v2653, 1.0
        %v2675 = vadd.f32 %v2655, 1.0
        %v2676 = vadd.f32 %v2657, 1.0
        %v2677 = vadd.f32 %v2659, 1.0
        %v2678 = vadd.f32 %v2661, 1.0
        %v2679 = vadd.f32 %v2663, 1.0
        %v2680 = vadd.f32 %v2665, 1.0
        %v2681 = vadd.f32 %v2667, 1.0
        %v2682 = vrcp.pop %v2668
        %v2683 = vmul.f32 1.0, %v2682
        %v2684 = vrcp.pop %v2669
        %v2685 = vmul.f32 1.0, %v2684
        %v2686 = vrcp.pop %v2670
        %v2687 = vmul.f32 1.0, %v2686
        %v2688 = vrcp.pop %v2671
        %v2689 = vmul.f32 1.0, %v2688
        %v2690 = vrcp.pop %v2672
        %v2691 = vmul.f32 1.0, %v2690
        %v2692 = vrcp.pop %v2673
        %v2693 = vmul.f32 1.0, %v2692
        %v2694 = vrcp.pop %v2674
        %v2695 = vmul.f32 1.0, %v2694
        %v2696 = vrcp.pop %v2675
        %v2697 = vmul.f32 1.0, %v2696
        %v2698 = vrcp.pop %v2676
        %v2699 = vmul.f32 1.0, %v2698
        %v2700 = vrcp.pop %v2677
        %v2701 = vmul.f32 1.0, %v2700
        %v2702 = vrcp.pop %v2678
        %v2703 = vmul.f32 1.0, %v2702
        %v2704 = vrcp.pop %v2679
        %v2705 = vmul.f32 1.0, %v2704
        %v2706 = vrcp.pop %v2680
        %v2707 = vmul.f32 1.0, %v2706
        %v2708 = vrcp.pop %v2681
        %v2709 = vmul.f32 1.0, %v2708
        %2710 = vst [vmem:[%s740] sm:$0xff] %v2683
        %2711 = vst [vmem:[%s740 + $0x8] sm:$0xff] %v2685
        %2712 = vst [vmem:[%s740 + $0x10] sm:$0xff] %v2687
        %2713 = vst [vmem:[%s740 + $0x18] sm:$0xff] %v2689
        %2714 = vst [vmem:[%s740 + $0x20] sm:$0xff] %v2691
        %2715 = vst [vmem:[%s740 + $0x28] sm:$0xff] %v2693
        %2716 = vst [vmem:[%s740 + $0x30] sm:$0xff] %v2695
        %2717 = vst [vmem:[%s740 + $0x38] sm:$0xff] %v2697
        %2718 = vst [vmem:[%s740 + $0x40] sm:$0xff] %v2699
        %2719 = vst [vmem:[%s740 + $0x48] sm:$0xff] %v2701
        %2720 = vst [vmem:[%s740 + $0x50] sm:$0xff] %v2703
        %2721 = vst [vmem:[%s740 + $0x58] sm:$0xff] %v2705
        %2722 = vst [vmem:[%s740 + $0x60] sm:$0xff] %v2707
        %2723 = vst [vmem:[%s740 + $0x68] sm:$0xff] %v2709
        %s2724 = sand.u32 %s493, 1
        %s2725 = scalar_lea.sflag [#allocation4], %s2724
        %s2726 = sand.u32 %s493, 1
        %s2727 = smul.addr %s2726, 112
        %s2728 = scalar_lea.vmem [#allocation13], %s2727
        // Predicated region
        $region129: #{tpu_custom_call.1} parent=103 // pred_check
          %p2729 = pneg %p503
        $region130: #{tpu_custom_call.1} parent=103 // pred_check_branch
          %2731 = sbr.rel (%p2729) target = $region132
        $region131: #{tpu_custom_call.1} parent=103 // pred_region
          %s2732 = smul.u32 2, %s39
          %s2734 = ssub.s32 1792, 1792
          %2735 = vsyncadd %s2725, %s2734
          %s2736 = smul.addr %s2732, 7
          %s2737 = smul.addr %s2736, 128
          %s2738 = scalar_lea.hbm %s21, %s2737
          %s2739 = sshll.u32 %s2728, 4
          %s2740 = int_to_ptr.vmem [resolvable:$true] %s2739
          %2745 = dma.vmem_to_hbm [thread:$0]  %s2740, 1792, %s2738, %s2725, 896, 896, 56
        $region132: #{tpu_custom_call.1} parent=103 // pred_fallthru
          _
      $region104: #{tpu_custom_call.1} parent=5 // pred_fallthru
        _
      %p2746 = scmp.le.s32.totalorder 2, %s34
      // Predicated region
      $region133: #{tpu_custom_call.1} parent=5 // pred_check
        %p2747 = pneg %p2746
      $region134: #{tpu_custom_call.1} parent=5 // pred_check_branch
        %2749 = sbr.rel (%p2747) target = $region136
      $region135: #{tpu_custom_call.1} parent=5 // pred_region
        %s2750 = ssub.s32 %s34, 2
        // Predicated region
        $region137: #{tpu_custom_call.1} parent=135 // pred_check
          %p2751 = pneg %p509
        $region138: #{tpu_custom_call.1} parent=135 // pred_check_branch
          %2753 = sbr.rel (%p2751) target = $region140
        $region139: #{tpu_custom_call.1} parent=135 // pred_region
          %s2754 = sand.u32 %s494, 1
          %s2755 = scalar_lea.sflag [#allocation4], %s2754
          %s2756 = sand.u32 %s494, 1
          %s2757 = smul.addr %s2756, 112
          %s2758 = scalar_lea.vmem [#allocation13], %s2757
          %2759 = dma.done %s2755, 1792
        $region140: #{tpu_custom_call.1} parent=135 // pred_fallthru
          _
      $region136: #{tpu_custom_call.1} parent=5 // pred_fallthru
        _
    $region6: #{tpu_custom_call.1} parent=1 // loop_footer
      %s38 = sadd.s32 1, %s34
    $region7: #{tpu_custom_call.1} parent=1 // loop_footer_branch
      %33 = sbr.rel target = $region3
    $region8: #{tpu_custom_call.1} parent=1 // loop_exit
      _
    %2760 = vsyncpa [#allocation3], 1
    %s2761 = scalar_lea.sflag [#allocation3], 1
    %2762 = vsyncpa %s2761, 1
    %2763 = vsyncpa [#allocation6], 1
    %2764 = vsyncpa [#allocation9], 1
    %2765 = vsyncpa [#allocation12], 1
    %2766 = vsyncpa [#allocation4], 1
    %s2767 = scalar_lea.sflag [#allocation4], 1
    %2768 = vsyncpa %s2767, 1

</llo_original>
